<compile_context>
chip_gen: v7x
topology: tpu7x:2x2x1
jax: 0.10.0
libtpu: 0.0.40
codegen_flags: <defaults>
</compile_context>

<pallas_src>
import functools

import jax
import jax.numpy as jnp
import numpy as np
from jax import lax
from jax.experimental import pallas as pl
from jax.experimental.pallas import tpu as pltpu


def _round_up(x, m):
    return ((x + m - 1) // m) * m


def _erf(x):
    # Abramowitz & Stegun 7.1.26 rational approximation, |err| <= 1.5e-7,
    # i.e. f32-exact for practical purposes.  Built only from exp/mul/add/div
    # so it lowers on every Pallas TPU backend (avoids relying on lax.erf
    # having a Mosaic lowering).  All constants are Python floats (literals).
    a1, a2, a3 = 0.254829592, -0.284496736, 1.421413741
    a4, a5, p = -1.453152027, 1.061405429, 0.3275911
    ax = jnp.abs(x)
    t = 1.0 / (1.0 + p * ax)
    poly = ((((a5 * t + a4) * t + a3) * t + a2) * t + a1) * t
    y = 1.0 - poly * jnp.exp(-ax * ax)
    return jnp.where(x >= 0.0, y, -y)


def _gelu_exact(x):
    # F.gelu default (erf-based), not the tanh approximation.
    return 0.5 * x * (1.0 + _erf(x * 0.7071067811865476))


def _uniform_hash_noise(shape, row_offset, seed):
    """Counter-based hash -> U[0,1) tie-break noise, generated in-kernel."""
    row = (lax.broadcasted_iota(jnp.int32, shape, 0) + row_offset).astype(jnp.uint32)
    col = lax.broadcasted_iota(jnp.int32, shape, 1).astype(jnp.uint32)
    seed_mix = np.uint32((int(seed) * 2246822519 + 374761393) % (2 ** 32))
    h = row * np.uint32(2654435761) + col * np.uint32(40503) + seed_mix
    h = h ^ (h >> 16)
    h = h * np.uint32(2246822519)
    h = h ^ (h >> 13)
    h = h * np.uint32(3266489917)
    h = h ^ (h >> 16)
    # top 23 bits -> exact f32 integer -> [0, 1)
    return (h >> 9).astype(jnp.int32).astype(jnp.float32) * (1.0 / 8388608.0)


# ----------------------------------------------------------------------------
# Stage 1: V = gelu(alpha * (x @ W + b)), row-tiled, bf16 outputs.
# ----------------------------------------------------------------------------
def _project_kernel(x_ref, w1_ref, b1_ref, w2_ref, b2_ref, v1_ref, v2_ref, *,
                    alpha, n_valid, tm):
    i = pl.program_id(0)
    x = x_ref[...]                                            # [tm, D] f32
    h1 = jnp.dot(x, w1_ref[...], preferred_element_type=jnp.float32) + b1_ref[...]
    h2 = jnp.dot(x, w2_ref[...], preferred_element_type=jnp.float32) + b2_ref[...]
    v1 = _gelu_exact(alpha * h1)
    v2 = _gelu_exact(alpha * h2)
    # Zero the zero-padded node rows so they contribute nothing downstream.
    row = lax.broadcasted_iota(jnp.int32, v1.shape, 0) + i * tm
    valid = row < n_valid
    v1_ref[...] = jnp.where(valid, v1, 0.0).astype(v1_ref.dtype)
    v2_ref[...] = jnp.where(valid, v2, 0.0).astype(v2_ref.dtype)


# ----------------------------------------------------------------------------
# Stage 2: adj row tiles (bf16 MXU, f32 accumulate) + per-row top-k mask.
# ----------------------------------------------------------------------------
def _adj_topk_kernel(v1_ref, v2_ref, adj_ref, *, k, n_valid, apply_topk, tm,
                     single_row_tile, seed):
    i = pl.program_id(0)
    row0 = i * tm
    v1_full = v1_ref[...]                                     # [Np, D] bf16
    v2_full = v2_ref[...]                                     # [Np, D] bf16
    contract_last = (((1,), (1,)), ((), ()))

    if single_row_tile:
        # Whole adjacency in one tile: b = (v1 @ v2.T).T, so compute `a` once
        # and use the transpose identity -> halves MXU work in this regime.
        a = lax.dot_general(v1_full, v2_full, contract_last,
                            preferred_element_type=jnp.float32)
        adj = jnp.maximum(a - a.T, 0.0)
    else:
        r0 = pl.multiple_of(row0, tm)
        v1_rows = v1_ref[pl.ds(r0, tm), :]
        v2_rows = v2_ref[pl.ds(r0, tm), :]
        a = lax.dot_general(v1_rows, v2_full, contract_last,
                            preferred_element_type=jnp.float32)
        b = lax.dot_general(v2_rows, v1_full, contract_last,
                            preferred_element_type=jnp.float32)
        adj = jnp.maximum(a - b, 0.0)

    if apply_topk:
        noisy = adj + _uniform_hash_noise(adj.shape, row0, seed) * 0.01
        # Padded columns must never win a top-k slot.
        col = lax.broadcasted_iota(jnp.int32, adj.shape, 1)
        noisy = jnp.where(col < n_valid, noisy, -jnp.inf)
        # k is a small static int: fully unrolled "remove current row max"
        # loop, single carried buffer.
        # TODO(synk): for large k, switch to a log-k threshold (counting) search.
        work = noisy
        for _ in range(k - 1):
            cur = jnp.max(work, axis=1, keepdims=True)
            work = jnp.where(work >= cur, -jnp.inf, work)
        kth = jnp.max(work, axis=1, keepdims=True)             # k-th largest
        adj = jnp.where(noisy >= kth, adj, 0.0)

    adj_ref[...] = adj.astype(adj_ref.dtype)


# ----------------------------------------------------------------------------
# Wrapper
# ----------------------------------------------------------------------------
def graph_constructor_forward(node_emb, w1, b1, w2, b2, *, k, alpha=1.0,
                              noise_seed=0, row_tile=256):
    """node_emb: [N, D] f32; w1/w2: [D, D] in (in, out) layout; b1/b2: [1, D]."""
    n, d = node_emb.shape
    n_pad = _round_up(max(n, 1), 128)          # lane-dense adj rows/cols

    # Largest row tile that divides the padded node count and keeps the
    # ~6 live [tm, n_pad] f32 intermediates comfortably inside scoped VMEM.
    tm = min(int(row_tile), n_pad)
    while tm > 8 and (n_pad % tm != 0 or tm * n_pad * 4 * 6 > 40 * 1024 * 1024):
        tm //= 2
    if n_pad % tm != 0 or tm % 8 != 0:
        tm = 128                                # always valid fallback
    num_row_tiles = n_pad // tm
    apply_topk = k < n

    x_pad = node_emb if n_pad == n else jnp.pad(node_emb, ((0, n_pad - n), (0, 0)))

    cparams = pltpu.CompilerParams(
        dimension_semantics=("parallel",),       # v7x: shard row tiles over 2 TCs
        vmem_limit_bytes=48 * 1024 * 1024,       # below v7x 64 MiB physical
    )

    # --- Stage 1: projections -> bf16 V1/V2 --------------------------------
    v1, v2 = pl.pallas_call(
        functools.partial(_project_kernel, alpha=float(alpha), n_valid=int(n),
                          tm=int(tm)),
        grid=(num_row_tiles,),
        in_specs=[
            pl.BlockSpec((tm, d), lambda i: (i, 0)),   # x row tile
            pl.BlockSpec((d, d), lambda i: (0, 0)),    # W1 (resident)
            pl.BlockSpec((1, d), lambda i: (0, 0)),    # b1 (resident)
            pl.BlockSpec((d, d), lambda i: (0, 0)),    # W2 (resident)
            pl.BlockSpec((1, d), lambda i: (0, 0)),    # b2 (resident)
        ],
        out_specs=[
            pl.BlockSpec((tm, d), lambda i: (i, 0)),
            pl.BlockSpec((tm, d), lambda i: (i, 0)),
        ],
        out_shape=[
            jax.ShapeDtypeStruct((n_pad, d), jnp.bfloat16),
            jax.ShapeDtypeStruct((n_pad, d), jnp.bfloat16),
        ],
        compiler_params=cparams,
    )(x_pad, w1, b1, w2, b2)

    # --- Stage 2: adjacency + top-k, row-tiled ------------------------------
    adj_pad = pl.pallas_call(
        functools.partial(_adj_topk_kernel, k=int(k), n_valid=int(n),
                          apply_topk=bool(apply_topk), tm=int(tm),
                          single_row_tile=(num_row_tiles == 1),
                          seed=int(noise_seed)),
        grid=(num_row_tiles,),
        in_specs=[
            pl.BlockSpec((n_pad, d), lambda i: (0, 0)),  # V1 resident in VMEM
            pl.BlockSpec((n_pad, d), lambda i: (0, 0)),  # V2 resident in VMEM
        ],
        out_specs=pl.BlockSpec((tm, n_pad), lambda i: (i, 0)),
        out_shape=jax.ShapeDtypeStruct((n_pad, n_pad), jnp.float32),
        compiler_params=cparams,
    )(v1, v2)

    return adj_pad[:n, :n]


if __name__ == "__main__":
    # Small, deterministic synthetic configuration.
    nnodes, dim, k, alpha = 16, 32, 4, 1.0

    key = jax.random.PRNGKey(0)
    k_x, k_w1, k_b1, k_w2, k_b2 = jax.random.split(key, 5)

    node_emb = jax.random.normal(k_x, (nnodes, dim), dtype=jnp.float32)

    # nn.Linear(dim, dim) params, stored directly in [in, out] layout.
    bound = float(1.0 / np.sqrt(dim))
    w1 = jax.random.uniform(k_w1, (dim, dim), jnp.float32, -bound, bound)
    b1 = jax.random.uniform(k_b1, (1, dim), jnp.float32, -bound, bound)
    w2 = jax.random.uniform(k_w2, (dim, dim), jnp.float32, -bound, bound)
    b2 = jax.random.uniform(k_b2, (1, dim), jnp.float32, -bound, bound)

    adj = graph_constructor_forward(node_emb, w1, b1, w2, b2, k=k, alpha=alpha)
    adj = jax.block_until_ready(adj)

    assert adj.shape == (nnodes, nnodes)
    # Each row keeps at most k nonzero entries (relu may already zero some).
    assert int(jnp.max(jnp.sum(adj != 0.0, axis=1))) <= k

    # Reference check: kept entries must match the dense (un-masked) adjacency
    # computed in plain JAX with the same bf16 quantization of V1/V2.
    hi = lax.Precision.HIGHEST
    v1r = _gelu_exact(alpha * (jnp.dot(node_emb, w1, precision=hi) + b1))
    v2r = _gelu_exact(alpha * (jnp.dot(node_emb, w2, precision=hi) + b2))
    v1r = v1r.astype(jnp.bfloat16).astype(jnp.float32)
    v2r = v2r.astype(jnp.bfloat16).astype(jnp.float32)
    adj_ref = jnp.maximum(jnp.dot(v1r, v2r.T, precision=hi)
                          - jnp.dot(v2r, v1r.T, precision=hi), 0.0)
    kept = adj != 0.0
    err = float(jnp.max(jnp.abs(jnp.where(kept, adj - adj_ref, 0.0))))
    assert err < 5e-2, f"max abs error on kept entries: {err}"

    print("KERNEL_OK")
</pallas_src>

<mosaic_0001>
module attributes {stable_mosaic.version = 11 : i64} {
  func.func @_project_kernel(%arg0: i32, %arg1: memref<128x32xf32, #tpu.memory_space<vmem>>, %arg2: memref<32x32xf32, #tpu.memory_space<vmem>>, %arg3: memref<1x32xf32, #tpu.memory_space<vmem>>, %arg4: memref<32x32xf32, #tpu.memory_space<vmem>>, %arg5: memref<1x32xf32, #tpu.memory_space<vmem>>, %arg6: memref<128x32xbf16, #tpu.memory_space<vmem>>, %arg7: memref<128x32xbf16, #tpu.memory_space<vmem>>) attributes {dimension_semantics = [#tpu.dimension_semantics<parallel>], iteration_bounds = array<i64: 1>, scalar_prefetch = 0 : i64, scratch_operands = 0 : i64, tpu.core_type = #tpu.core_type<tc>, window_params = [{transform_indices = @transform_0, window_bounds = array<i64: 128, 32>}, {pipeline_mode = #tpu.pipeline_mode<synchronous>, transform_indices = @transform_1, window_bounds = array<i64: 32, 32>}, {pipeline_mode = #tpu.pipeline_mode<synchronous>, transform_indices = @transform_2, window_bounds = array<i64: 1, 32>}, {pipeline_mode = #tpu.pipeline_mode<synchronous>, transform_indices = @transform_3, window_bounds = array<i64: 32, 32>}, {pipeline_mode = #tpu.pipeline_mode<synchronous>, transform_indices = @transform_4, window_bounds = array<i64: 1, 32>}, {transform_indices = @transform_5, window_bounds = array<i64: 128, 32>}, {transform_indices = @transform_6, window_bounds = array<i64: 128, 32>}]} {
    %c0 = arith.constant 0 : index
    %c0_0 = arith.constant 0 : index
    %0 = vector.load %arg1[%c0, %c0_0] : memref<128x32xf32, #tpu.memory_space<vmem>>, vector<128x32xf32>
    %c0_1 = arith.constant 0 : index
    %c0_2 = arith.constant 0 : index
    %1 = vector.load %arg2[%c0_1, %c0_2] : memref<32x32xf32, #tpu.memory_space<vmem>>, vector<32x32xf32>
    %cst = arith.constant dense<0.000000e+00> : vector<128x32xf32>
    %2 = tpu.matmul %0, %1, %cst {dimension_numbers = #tpu.dot_dimension_numbers<[1], [0], [0], [1], [0, 0, 1, 1], [], []>} : vector<128x32xf32>, vector<32x32xf32>, vector<128x32xf32> -> vector<128x32xf32>
    %c0_3 = arith.constant 0 : index
    %c0_4 = arith.constant 0 : index
    %3 = vector.load %arg3[%c0_3, %c0_4] : memref<1x32xf32, #tpu.memory_space<vmem>>, vector<1x32xf32>
    %4 = vector.broadcast %3 : vector<1x32xf32> to vector<128x32xf32>
    %5 = arith.addf %2, %4 : vector<128x32xf32>
    %c0_5 = arith.constant 0 : index
    %c0_6 = arith.constant 0 : index
    %6 = vector.load %arg4[%c0_5, %c0_6] : memref<32x32xf32, #tpu.memory_space<vmem>>, vector<32x32xf32>
    %cst_7 = arith.constant dense<0.000000e+00> : vector<128x32xf32>
    %7 = tpu.matmul %0, %6, %cst_7 {dimension_numbers = #tpu.dot_dimension_numbers<[1], [0], [0], [1], [0, 0, 1, 1], [], []>} : vector<128x32xf32>, vector<32x32xf32>, vector<128x32xf32> -> vector<128x32xf32>
    %c0_8 = arith.constant 0 : index
    %c0_9 = arith.constant 0 : index
    %8 = vector.load %arg5[%c0_8, %c0_9] : memref<1x32xf32, #tpu.memory_space<vmem>>, vector<1x32xf32>
    %9 = vector.broadcast %8 : vector<1x32xf32> to vector<128x32xf32>
    %10 = arith.addf %7, %9 : vector<128x32xf32>
    %cst_10 = arith.constant 1.000000e+00 : f32
    %11 = vector.broadcast %cst_10 : f32 to vector<128x32xf32>
    %12 = arith.mulf %11, %5 : vector<128x32xf32>
    %cst_11 = arith.constant 5.000000e-01 : f32
    %13 = vector.broadcast %cst_11 : f32 to vector<128x32xf32>
    %14 = arith.mulf %13, %12 : vector<128x32xf32>
    %cst_12 = arith.constant 0.707106769 : f32
    %15 = vector.broadcast %cst_12 : f32 to vector<128x32xf32>
    %16 = arith.mulf %12, %15 : vector<128x32xf32>
    %17 = math.absf %16 : vector<128x32xf32>
    %cst_13 = arith.constant 0.327591091 : f32
    %18 = vector.broadcast %cst_13 : f32 to vector<128x32xf32>
    %19 = arith.mulf %18, %17 : vector<128x32xf32>
    %cst_14 = arith.constant 1.000000e+00 : f32
    %20 = vector.broadcast %cst_14 : f32 to vector<128x32xf32>
    %21 = arith.addf %20, %19 : vector<128x32xf32>
    %cst_15 = arith.constant 1.000000e+00 : f32
    %22 = vector.broadcast %cst_15 : f32 to vector<128x32xf32>
    %23 = arith.divf %22, %21 : vector<128x32xf32>
    %cst_16 = arith.constant 1.06140542 : f32
    %24 = vector.broadcast %cst_16 : f32 to vector<128x32xf32>
    %25 = arith.mulf %24, %23 : vector<128x32xf32>
    %cst_17 = arith.constant -1.45315206 : f32
    %26 = vector.broadcast %cst_17 : f32 to vector<128x32xf32>
    %27 = arith.addf %25, %26 : vector<128x32xf32>
    %28 = arith.mulf %27, %23 : vector<128x32xf32>
    %cst_18 = arith.constant 1.42141378 : f32
    %29 = vector.broadcast %cst_18 : f32 to vector<128x32xf32>
    %30 = arith.addf %28, %29 : vector<128x32xf32>
    %31 = arith.mulf %30, %23 : vector<128x32xf32>
    %cst_19 = arith.constant -0.284496725 : f32
    %32 = vector.broadcast %cst_19 : f32 to vector<128x32xf32>
    %33 = arith.addf %31, %32 : vector<128x32xf32>
    %34 = arith.mulf %33, %23 : vector<128x32xf32>
    %cst_20 = arith.constant 0.254829586 : f32
    %35 = vector.broadcast %cst_20 : f32 to vector<128x32xf32>
    %36 = arith.addf %34, %35 : vector<128x32xf32>
    %37 = arith.mulf %36, %23 : vector<128x32xf32>
    %cst_21 = arith.constant 0.000000e+00 : f32
    %38 = vector.broadcast %cst_21 : f32 to vector<128x32xf32>
    %39 = arith.subf %38, %17 : vector<128x32xf32>
    %40 = arith.mulf %39, %17 : vector<128x32xf32>
    %41 = math.exp %40 : vector<128x32xf32>
    %42 = arith.mulf %37, %41 : vector<128x32xf32>
    %cst_22 = arith.constant 1.000000e+00 : f32
    %43 = vector.broadcast %cst_22 : f32 to vector<128x32xf32>
    %44 = arith.subf %43, %42 : vector<128x32xf32>
    %cst_23 = arith.constant 0.000000e+00 : f32
    %45 = vector.broadcast %cst_23 : f32 to vector<128x32xf32>
    %46 = arith.cmpf oge, %16, %45 : vector<128x32xf32>
    %cst_24 = arith.constant 0.000000e+00 : f32
    %47 = vector.broadcast %cst_24 : f32 to vector<128x32xf32>
    %48 = arith.subf %47, %44 : vector<128x32xf32>
    %49 = arith.select %46, %44, %48 : vector<128x32xi1>, vector<128x32xf32>
    %cst_25 = arith.constant 1.000000e+00 : f32
    %50 = vector.broadcast %cst_25 : f32 to vector<128x32xf32>
    %51 = arith.addf %50, %49 : vector<128x32xf32>
    %52 = arith.mulf %14, %51 : vector<128x32xf32>
    %cst_26 = arith.constant 1.000000e+00 : f32
    %53 = vector.broadcast %cst_26 : f32 to vector<128x32xf32>
    %54 = arith.mulf %53, %10 : vector<128x32xf32>
    %cst_27 = arith.constant 5.000000e-01 : f32
    %55 = vector.broadcast %cst_27 : f32 to vector<128x32xf32>
    %56 = arith.mulf %55, %54 : vector<128x32xf32>
    %cst_28 = arith.constant 0.707106769 : f32
    %57 = vector.broadcast %cst_28 : f32 to vector<128x32xf32>
    %58 = arith.mulf %54, %57 : vector<128x32xf32>
    %59 = math.absf %58 : vector<128x32xf32>
    %cst_29 = arith.constant 0.327591091 : f32
    %60 = vector.broadcast %cst_29 : f32 to vector<128x32xf32>
    %61 = arith.mulf %60, %59 : vector<128x32xf32>
    %cst_30 = arith.constant 1.000000e+00 : f32
    %62 = vector.broadcast %cst_30 : f32 to vector<128x32xf32>
    %63 = arith.addf %62, %61 : vector<128x32xf32>
    %cst_31 = arith.constant 1.000000e+00 : f32
    %64 = vector.broadcast %cst_31 : f32 to vector<128x32xf32>
    %65 = arith.divf %64, %63 : vector<128x32xf32>
    %cst_32 = arith.constant 1.06140542 : f32
    %66 = vector.broadcast %cst_32 : f32 to vector<128x32xf32>
    %67 = arith.mulf %66, %65 : vector<128x32xf32>
    %cst_33 = arith.constant -1.45315206 : f32
    %68 = vector.broadcast %cst_33 : f32 to vector<128x32xf32>
    %69 = arith.addf %67, %68 : vector<128x32xf32>
    %70 = arith.mulf %69, %65 : vector<128x32xf32>
    %cst_34 = arith.constant 1.42141378 : f32
    %71 = vector.broadcast %cst_34 : f32 to vector<128x32xf32>
    %72 = arith.addf %70, %71 : vector<128x32xf32>
    %73 = arith.mulf %72, %65 : vector<128x32xf32>
    %cst_35 = arith.constant -0.284496725 : f32
    %74 = vector.broadcast %cst_35 : f32 to vector<128x32xf32>
    %75 = arith.addf %73, %74 : vector<128x32xf32>
    %76 = arith.mulf %75, %65 : vector<128x32xf32>
    %cst_36 = arith.constant 0.254829586 : f32
    %77 = vector.broadcast %cst_36 : f32 to vector<128x32xf32>
    %78 = arith.addf %76, %77 : vector<128x32xf32>
    %79 = arith.mulf %78, %65 : vector<128x32xf32>
    %cst_37 = arith.constant 0.000000e+00 : f32
    %80 = vector.broadcast %cst_37 : f32 to vector<128x32xf32>
    %81 = arith.subf %80, %59 : vector<128x32xf32>
    %82 = arith.mulf %81, %59 : vector<128x32xf32>
    %83 = math.exp %82 : vector<128x32xf32>
    %84 = arith.mulf %79, %83 : vector<128x32xf32>
    %cst_38 = arith.constant 1.000000e+00 : f32
    %85 = vector.broadcast %cst_38 : f32 to vector<128x32xf32>
    %86 = arith.subf %85, %84 : vector<128x32xf32>
    %cst_39 = arith.constant 0.000000e+00 : f32
    %87 = vector.broadcast %cst_39 : f32 to vector<128x32xf32>
    %88 = arith.cmpf oge, %58, %87 : vector<128x32xf32>
    %cst_40 = arith.constant 0.000000e+00 : f32
    %89 = vector.broadcast %cst_40 : f32 to vector<128x32xf32>
    %90 = arith.subf %89, %86 : vector<128x32xf32>
    %91 = arith.select %88, %86, %90 : vector<128x32xi1>, vector<128x32xf32>
    %cst_41 = arith.constant 1.000000e+00 : f32
    %92 = vector.broadcast %cst_41 : f32 to vector<128x32xf32>
    %93 = arith.addf %92, %91 : vector<128x32xf32>
    %94 = arith.mulf %56, %93 : vector<128x32xf32>
    %95 = tpu.iota {dimensions = array<i32: 0>} : vector<128x32xi32>
    %c128_i32 = arith.constant 128 : i32
    %96 = arith.muli %arg0, %c128_i32 : i32
    %97 = vector.broadcast %96 : i32 to vector<128x32xi32>
    %98 = arith.addi %95, %97 : vector<128x32xi32>
    %c16_i32 = arith.constant 16 : i32
    %99 = vector.broadcast %c16_i32 : i32 to vector<128x32xi32>
    %100 = arith.cmpi slt, %98, %99 : vector<128x32xi32>
    %cst_42 = arith.constant 0.000000e+00 : f32
    %101 = vector.broadcast %cst_42 : f32 to vector<128x32xf32>
    %102 = arith.select %100, %52, %101 : vector<128x32xi1>, vector<128x32xf32>
    %103 = arith.truncf %102 : vector<128x32xf32> to vector<128x32xbf16>
    %c0_43 = arith.constant 0 : index
    %c0_44 = arith.constant 0 : index
    %104 = vector.load %arg6[%c0_43, %c0_44] : memref<128x32xbf16, #tpu.memory_space<vmem>>, vector<128x32xbf16>
    tpu.vector_store %arg6[%c0_43, %c0_44], %103 {strides = array<i32>} : memref<128x32xbf16, #tpu.memory_space<vmem>>, vector<128x32xbf16>,
    %cst_45 = arith.constant 0.000000e+00 : f32
    %105 = vector.broadcast %cst_45 : f32 to vector<128x32xf32>
    %106 = arith.select %100, %94, %105 : vector<128x32xi1>, vector<128x32xf32>
    %107 = arith.truncf %106 : vector<128x32xf32> to vector<128x32xbf16>
    %c0_46 = arith.constant 0 : index
    %c0_47 = arith.constant 0 : index
    %108 = vector.load %arg7[%c0_46, %c0_47] : memref<128x32xbf16, #tpu.memory_space<vmem>>, vector<128x32xbf16>
    tpu.vector_store %arg7[%c0_46, %c0_47], %107 {strides = array<i32>} : memref<128x32xbf16, #tpu.memory_space<vmem>>, vector<128x32xbf16>,
    return
  }
  func.func @transform_0(%arg0: i32) -> (i32, i32) {
    %c0_i32 = arith.constant 0 : i32
    %c0_i32_0 = arith.constant 0 : i32
    return %arg0, %c0_i32 : i32, i32
  }
  func.func @transform_1(%arg0: i32) -> (i32, i32) {
    %c0_i32 = arith.constant 0 : i32
    %c0_i32_0 = arith.constant 0 : i32
    %c0_i32_1 = arith.constant 0 : i32
    return %c0_i32, %c0_i32_0 : i32, i32
  }
  func.func @transform_2(%arg0: i32) -> (i32, i32) {
    %c0_i32 = arith.constant 0 : i32
    %c0_i32_0 = arith.constant 0 : i32
    %c0_i32_1 = arith.constant 0 : i32
    return %c0_i32, %c0_i32_0 : i32, i32
  }
  func.func @transform_3(%arg0: i32) -> (i32, i32) {
    %c0_i32 = arith.constant 0 : i32
    %c0_i32_0 = arith.constant 0 : i32
    %c0_i32_1 = arith.constant 0 : i32
    return %c0_i32, %c0_i32_0 : i32, i32
  }
  func.func @transform_4(%arg0: i32) -> (i32, i32) {
    %c0_i32 = arith.constant 0 : i32
    %c0_i32_0 = arith.constant 0 : i32
    %c0_i32_1 = arith.constant 0 : i32
    return %c0_i32, %c0_i32_0 : i32, i32
  }
  func.func @transform_5(%arg0: i32) -> (i32, i32) {
    %c0_i32 = arith.constant 0 : i32
    %c0_i32_0 = arith.constant 0 : i32
    return %arg0, %c0_i32 : i32, i32
  }
  func.func @transform_6(%arg0: i32) -> (i32, i32) {
    %c0_i32 = arith.constant 0 : i32
    %c0_i32_0 = arith.constant 0 : i32
    return %arg0, %c0_i32 : i32, i32
  }
}

</mosaic_0001>

<llo_original>
// kernel: tpu_custom_call.1
$region0: #{tpu_custom_call.1}
  #allocation0 [shape = 'u32[]', space=smem, size = 0x4, offset = 0x4, fixed_abs, tag = 'smem constant byte address 0x4 - core index']
  #allocation1 [shape = 'u32[144,128]{1,0:T(1,128)}', space=vmem, size = 0x12000, scoped, tag = 'internal scratch']
  %s0 = inlined_call_operand.vmem [shape: f32[128,32], index: 0, kind: input, shape index: {}]
  %s1 = inlined_call_operand.vmem [shape: f32[32,32], index: 1, kind: input, shape index: {}]
  %s2 = inlined_call_operand.vmem [shape: f32[1,32], index: 2, kind: input, shape index: {}]
  %s3 = inlined_call_operand.vmem [shape: f32[32,32], index: 3, kind: input, shape index: {}]
  %s4 = inlined_call_operand.vmem [shape: f32[1,32], index: 4, kind: input, shape index: {}]
  %s5 = inlined_call_operand.vmem [shape: bf16[128,32], index: 5, kind: output, shape index: {0}]
  %s6 = inlined_call_operand.vmem [shape: bf16[128,32], index: 6, kind: output, shape index: {1}]
  %7 = xla_tuple %s5, %s6
  %s8 = sld [smem:[#allocation0]]
  $region38: #{tpu_custom_call.1} parent=0
    _
  %s10 = ssub.s32 1, %s8
  %s11 = scalar_select 0, %s10, %s8
  // Predicated region
  $region2: #{tpu_custom_call.1} parent=0 // pred_check
    _
  $region3: #{tpu_custom_call.1} parent=0 // pred_check_branch
    %13 = sbr.rel (0) target = $region5
  $region4: #{tpu_custom_call.1} parent=0 // pred_region
    _
  $region5: #{tpu_custom_call.1} parent=0 // pred_fallthru
    _
  // Predicated region
  $region6: #{tpu_custom_call.1} parent=0 // pred_check
    _
  $region7: #{tpu_custom_call.1} parent=0 // pred_check_branch
    %15 = sbr.rel (0) target = $region9
  $region8: #{tpu_custom_call.1} parent=0 // pred_region
    _
  $region9: #{tpu_custom_call.1} parent=0 // pred_fallthru
    _
  // Predicated region
  $region10: #{tpu_custom_call.1} parent=0 // pred_check
    _
  $region11: #{tpu_custom_call.1} parent=0 // pred_check_branch
    %17 = sbr.rel (0) target = $region13
  $region12: #{tpu_custom_call.1} parent=0 // pred_region
    _
  $region13: #{tpu_custom_call.1} parent=0 // pred_fallthru
    _
  // Predicated region
  $region14: #{tpu_custom_call.1} parent=0 // pred_check
    _
  $region15: #{tpu_custom_call.1} parent=0 // pred_check_branch
    %19 = sbr.rel (0) target = $region17
  $region16: #{tpu_custom_call.1} parent=0 // pred_region
    _
  $region17: #{tpu_custom_call.1} parent=0 // pred_fallthru
    _
  // Predicated region
  $region18: #{tpu_custom_call.1} parent=0 // pred_check
    _
  $region19: #{tpu_custom_call.1} parent=0 // pred_check_branch
    %21 = sbr.rel (0) target = $region21
  $region20: #{tpu_custom_call.1} parent=0 // pred_region
    _
  $region21: #{tpu_custom_call.1} parent=0 // pred_fallthru
    _
  %v22 = vld [vmem:[%s0] sm:$0xff]
  %v23 = vld [vmem:[%s0 + $0x8] sm:$0xff]
  %v24 = vld [vmem:[%s0 + $0x10] sm:$0xff]
  %v25 = vld [vmem:[%s0 + $0x18] sm:$0xff]
  %v26 = vld [vmem:[%s0 + $0x20] sm:$0xff]
  %v27 = vld [vmem:[%s0 + $0x28] sm:$0xff]
  %v28 = vld [vmem:[%s0 + $0x30] sm:$0xff]
  %v29 = vld [vmem:[%s0 + $0x38] sm:$0xff]
  %v30 = vld [vmem:[%s0 + $0x40] sm:$0xff]
  %v31 = vld [vmem:[%s0 + $0x48] sm:$0xff]
  %v32 = vld [vmem:[%s0 + $0x50] sm:$0xff]
  %v33 = vld [vmem:[%s0 + $0x58] sm:$0xff]
  %v34 = vld [vmem:[%s0 + $0x60] sm:$0xff]
  %v35 = vld [vmem:[%s0 + $0x68] sm:$0xff]
  %v36 = vld [vmem:[%s0 + $0x70] sm:$0xff]
  %v37 = vld [vmem:[%s0 + $0x78] sm:$0xff]
  %v38 = vld [vmem:[%s1] sm:$0xff]
  %v39 = vld [vmem:[%s1 + $0x8] sm:$0xff]
  %v40 = vld [vmem:[%s1 + $0x10] sm:$0xff]
  %v41 = vld [vmem:[%s1 + $0x18] sm:$0xff]
  %v42 = vld [vmem:[%s2] sm:$0x1]
  %v44 = vlaneseq
  %v45 = vshrl.u32 %v44, 7
  %v46 = vsub.s32 0, %v45
  %v47 = vrot.slane %v42, %v46
  %vm49 = vcmask 261120
  %v51 = vsel %vm49, %v22, 0
  %v54 = vsel %vm49, %v23, 0
  %v57 = vsel %vm49, %v24, 0
  %v60 = vsel %vm49, %v25, 0
  %v63 = vsel %vm49, %v26, 0
  %v66 = vsel %vm49, %v27, 0
  %v69 = vsel %vm49, %v28, 0
  %v72 = vsel %vm49, %v29, 0
  %v75 = vsel %vm49, %v30, 0
  %v78 = vsel %vm49, %v31, 0
  %v81 = vsel %vm49, %v32, 0
  %v84 = vsel %vm49, %v33, 0
  %v87 = vsel %vm49, %v34, 0
  %v90 = vsel %vm49, %v35, 0
  %v93 = vsel %vm49, %v36, 0
  %v96 = vsel %vm49, %v37, 0
  %98 = vmatprep.subr.mxu0 0.0
  %99 = vmatpush1.msra.mxu0 %v38
  %100 = vmatprep.subr.mxu0 0.0
  %101 = vmatpush1.msra.mxu0 %v39
  %102 = vmatprep.subr.mxu0 0.0
  %103 = vmatpush1.msra.mxu0 %v40
  %104 = vmatprep.subr.mxu0 0.0
  %105 = vmatpush1.msra.mxu0 %v41
  %106 = vmatprep.subr.mxu0 0.0
  %107 = vmatpush1.msra.mxu0 0.0
  %108 = vmatprep.subr.mxu0 0.0
  %109 = vmatpush1.msra.mxu0 0.0
  %110 = vmatprep.subr.mxu0 0.0
  %111 = vmatpush1.msra.mxu0 0.0
  %112 = vmatprep.subr.mxu0 0.0
  %113 = vmatpush1.msra.mxu0 0.0
  %114 = vmatprep.subr.mxu0 0.0
  %115 = vmatpush1.msra.mxu0 0.0
  %116 = vmatprep.subr.mxu0 0.0
  %117 = vmatpush1.msra.mxu0 0.0
  %118 = vmatprep.subr.mxu0 0.0
  %119 = vmatpush1.msra.mxu0 0.0
  %120 = vmatprep.subr.mxu0 0.0
  %121 = vmatpush1.msra.mxu0 0.0
  %122 = vmatprep.subr.mxu0 0.0
  %123 = vmatpush1.msra.mxu0 0.0
  %124 = vmatprep.subr.mxu0 0.0
  %125 = vmatpush1.msra.mxu0 0.0
  %126 = vmatprep.subr.mxu0 0.0
  %127 = vmatpush1.msra.mxu0 0.0
  %128 = vmatprep.subr.mxu0 0.0
  %129 = vmatpush1.msra.mxu0 0.0
  %130 = vmatprep.subr.mxu0 0.0
  %131 = vmatpush1.msra.mxu0 0.0
  %132 = vmatprep.subr.mxu0 0.0
  %133 = vmatpush1.msra.mxu0 0.0
  %134 = vmatprep.subr.mxu0 0.0
  %135 = vmatpush1.msra.mxu0 0.0
  %136 = vmatprep.subr.mxu0 0.0
  %137 = vmatpush1.msra.mxu0 0.0
  %138 = vmatprep.subr.mxu0 0.0
  %139 = vmatpush1.msra.mxu0 0.0
  %140 = vmatprep.subr.mxu0 0.0
  %141 = vmatpush1.msra.mxu0 0.0
  %142 = vmatprep.subr.mxu0 0.0
  %143 = vmatpush1.msra.mxu0 0.0
  %144 = vmatprep.subr.mxu0 0.0
  %145 = vmatpush1.msra.mxu0 0.0
  %146 = vmatprep.subr.mxu0 0.0
  %147 = vmatpush1.msra.mxu0 0.0
  %148 = vmatprep.subr.mxu0 0.0
  %149 = vmatpush1.msra.mxu0 0.0
  %150 = vmatprep.subr.mxu0 0.0
  %151 = vmatpush1.msra.mxu0 0.0
  %152 = vmatprep.subr.mxu0 0.0
  %153 = vmatpush1.msra.mxu0 0.0
  %154 = vmatprep.subr.mxu0 0.0
  %155 = vmatpush1.msra.mxu0 0.0
  %156 = vmatprep.subr.mxu0 0.0
  %157 = vmatpush1.msra.mxu0 0.0
  %158 = vmatprep.subr.mxu0 0.0
  %159 = vmatpush1.msra.mxu0 0.0
  %160 = vmatprep.subr.mxu0 0.0
  %161 = vmatpush1.msra.mxu0 0.0
  %162 = vmatprep.mubr.f32.mxu0 0.0
  %163 = vmatmul.mubr.f32.gmra.mrb[0].mxu0 %v51
  %v164 = vpop.f32.mrb[0].mxu0
  %v165 = vadd.f32 %v47, %v164
  %v166 = vpop.f32.mrb[0].mxu0
  %167 = vmatprep.mubr.f32.mxu0 0.0
  %168 = vmatmul.mubr.f32.gmra.mrb[0].mxu0 %v54
  %v169 = vpop.f32.mrb[0].mxu0
  %v170 = vadd.f32 %v47, %v169
  %v171 = vpop.f32.mrb[0].mxu0
  %172 = vmatprep.mubr.f32.mxu0 0.0
  %173 = vmatmul.mubr.f32.gmra.mrb[0].mxu0 %v57
  %v174 = vpop.f32.mrb[0].mxu0
  %v175 = vadd.f32 %v47, %v174
  %v176 = vpop.f32.mrb[0].mxu0
  %177 = vmatprep.mubr.f32.mxu0 0.0
  %178 = vmatmul.mubr.f32.gmra.mrb[0].mxu0 %v60
  %v179 = vpop.f32.mrb[0].mxu0
  %v180 = vadd.f32 %v47, %v179
  %v181 = vpop.f32.mrb[0].mxu0
  %182 = vmatprep.mubr.f32.mxu0 0.0
  %183 = vmatmul.mubr.f32.gmra.mrb[0].mxu0 %v63
  %v184 = vpop.f32.mrb[0].mxu0
  %v185 = vadd.f32 %v47, %v184
  %v186 = vpop.f32.mrb[0].mxu0
  %187 = vmatprep.mubr.f32.mxu0 0.0
  %188 = vmatmul.mubr.f32.gmra.mrb[0].mxu0 %v66
  %v189 = vpop.f32.mrb[0].mxu0
  %v190 = vadd.f32 %v47, %v189
  %v191 = vpop.f32.mrb[0].mxu0
  %192 = vmatprep.mubr.f32.mxu0 0.0
  %193 = vmatmul.mubr.f32.gmra.mrb[0].mxu0 %v69
  %v194 = vpop.f32.mrb[0].mxu0
  %v195 = vadd.f32 %v47, %v194
  %v196 = vpop.f32.mrb[0].mxu0
  %197 = vmatprep.mubr.f32.mxu0 0.0
  %198 = vmatmul.mubr.f32.gmra.mrb[0].mxu0 %v72
  %v199 = vpop.f32.mrb[0].mxu0
  %v200 = vadd.f32 %v47, %v199
  %v201 = vpop.f32.mrb[0].mxu0
  %202 = vmatprep.mubr.f32.mxu0 0.0
  %203 = vmatmul.mubr.f32.gmra.mrb[0].mxu0 %v75
  %v204 = vpop.f32.mrb[0].mxu0
  %v205 = vadd.f32 %v47, %v204
  %v206 = vpop.f32.mrb[0].mxu0
  %207 = vmatprep.mubr.f32.mxu0 0.0
  %208 = vmatmul.mubr.f32.gmra.mrb[0].mxu0 %v78
  %v209 = vpop.f32.mrb[0].mxu0
  %v210 = vadd.f32 %v47, %v209
  %v211 = vpop.f32.mrb[0].mxu0
  %212 = vmatprep.mubr.f32.mxu0 0.0
  %213 = vmatmul.mubr.f32.gmra.mrb[0].mxu0 %v81
  %v214 = vpop.f32.mrb[0].mxu0
  %v215 = vadd.f32 %v47, %v214
  %v216 = vpop.f32.mrb[0].mxu0
  %217 = vmatprep.mubr.f32.mxu0 0.0
  %218 = vmatmul.mubr.f32.gmra.mrb[0].mxu0 %v84
  %v219 = vpop.f32.mrb[0].mxu0
  %v220 = vadd.f32 %v47, %v219
  %v221 = vpop.f32.mrb[0].mxu0
  %222 = vmatprep.mubr.f32.mxu0 0.0
  %223 = vmatmul.mubr.f32.gmra.mrb[0].mxu0 %v87
  %v224 = vpop.f32.mrb[0].mxu0
  %v225 = vadd.f32 %v47, %v224
  %v226 = vpop.f32.mrb[0].mxu0
  %227 = vmatprep.mubr.f32.mxu0 0.0
  %228 = vmatmul.mubr.f32.gmra.mrb[0].mxu0 %v90
  %v229 = vpop.f32.mrb[0].mxu0
  %v230 = vadd.f32 %v47, %v229
  %v231 = vpop.f32.mrb[0].mxu0
  %232 = vmatprep.mubr.f32.mxu0 0.0
  %233 = vmatmul.mubr.f32.gmra.mrb[0].mxu0 %v93
  %v234 = vpop.f32.mrb[0].mxu0
  %v235 = vadd.f32 %v47, %v234
  %v236 = vpop.f32.mrb[0].mxu0
  %237 = vmatprep.mubr.f32.mxu0 0.0
  %238 = vmatmul.mubr.f32.gmra.mrb[0].mxu0 %v96
  %v239 = vpop.f32.mrb[0].mxu0
  %v240 = vadd.f32 %v47, %v239
  %v241 = vpop.f32.mrb[0].mxu0
  %242 = vdwg.mxu0
  %v243 = vld [vmem:[%s3] sm:$0xff]
  %v244 = vld [vmem:[%s3 + $0x8] sm:$0xff]
  %v245 = vld [vmem:[%s3 + $0x10] sm:$0xff]
  %v246 = vld [vmem:[%s3 + $0x18] sm:$0xff]
  %v247 = vld [vmem:[%s4] sm:$0x1]
  %v249 = vlaneseq
  %v250 = vshrl.u32 %v249, 7
  %v251 = vsub.s32 0, %v250
  %v252 = vrot.slane %v247, %v251
  %254 = vmatprep.subr.mxu0 0.0
  %255 = vmatpush1.msra.mxu0 %v243
  %256 = vmatprep.subr.mxu0 0.0
  %257 = vmatpush1.msra.mxu0 %v244
  %258 = vmatprep.subr.mxu0 0.0
  %259 = vmatpush1.msra.mxu0 %v245
  %260 = vmatprep.subr.mxu0 0.0
  %261 = vmatpush1.msra.mxu0 %v246
  %262 = vmatprep.subr.mxu0 0.0
  %263 = vmatpush1.msra.mxu0 0.0
  %264 = vmatprep.subr.mxu0 0.0
  %265 = vmatpush1.msra.mxu0 0.0
  %266 = vmatprep.subr.mxu0 0.0
  %267 = vmatpush1.msra.mxu0 0.0
  %268 = vmatprep.subr.mxu0 0.0
  %269 = vmatpush1.msra.mxu0 0.0
  %270 = vmatprep.subr.mxu0 0.0
  %271 = vmatpush1.msra.mxu0 0.0
  %272 = vmatprep.subr.mxu0 0.0
  %273 = vmatpush1.msra.mxu0 0.0
  %274 = vmatprep.subr.mxu0 0.0
  %275 = vmatpush1.msra.mxu0 0.0
  %276 = vmatprep.subr.mxu0 0.0
  %277 = vmatpush1.msra.mxu0 0.0
  %278 = vmatprep.subr.mxu0 0.0
  %279 = vmatpush1.msra.mxu0 0.0
  %280 = vmatprep.subr.mxu0 0.0
  %281 = vmatpush1.msra.mxu0 0.0
  %282 = vmatprep.subr.mxu0 0.0
  %283 = vmatpush1.msra.mxu0 0.0
  %284 = vmatprep.subr.mxu0 0.0
  %285 = vmatpush1.msra.mxu0 0.0
  %286 = vmatprep.subr.mxu0 0.0
  %287 = vmatpush1.msra.mxu0 0.0
  %288 = vmatprep.subr.mxu0 0.0
  %289 = vmatpush1.msra.mxu0 0.0
  %290 = vmatprep.subr.mxu0 0.0
  %291 = vmatpush1.msra.mxu0 0.0
  %292 = vmatprep.subr.mxu0 0.0
  %293 = vmatpush1.msra.mxu0 0.0
  %294 = vmatprep.subr.mxu0 0.0
  %295 = vmatpush1.msra.mxu0 0.0
  %296 = vmatprep.subr.mxu0 0.0
  %297 = vmatpush1.msra.mxu0 0.0
  %298 = vmatprep.subr.mxu0 0.0
  %299 = vmatpush1.msra.mxu0 0.0
  %300 = vmatprep.subr.mxu0 0.0
  %301 = vmatpush1.msra.mxu0 0.0
  %302 = vmatprep.subr.mxu0 0.0
  %303 = vmatpush1.msra.mxu0 0.0
  %304 = vmatprep.subr.mxu0 0.0
  %305 = vmatpush1.msra.mxu0 0.0
  %306 = vmatprep.subr.mxu0 0.0
  %307 = vmatpush1.msra.mxu0 0.0
  %308 = vmatprep.subr.mxu0 0.0
  %309 = vmatpush1.msra.mxu0 0.0
  %310 = vmatprep.subr.mxu0 0.0
  %311 = vmatpush1.msra.mxu0 0.0
  %312 = vmatprep.subr.mxu0 0.0
  %313 = vmatpush1.msra.mxu0 0.0
  %314 = vmatprep.subr.mxu0 0.0
  %315 = vmatpush1.msra.mxu0 0.0
  %316 = vmatprep.subr.mxu0 0.0
  %317 = vmatpush1.msra.mxu0 0.0
  %318 = vmatprep.mubr.f32.mxu0 0.0
  %319 = vmatmul.mubr.f32.gmra.mrb[0].mxu0 %v51
  %v320 = vpop.f32.mrb[0].mxu0
  %v321 = vadd.f32 %v252, %v320
  %v322 = vpop.f32.mrb[0].mxu0
  %323 = vmatprep.mubr.f32.mxu0 0.0
  %324 = vmatmul.mubr.f32.gmra.mrb[0].mxu0 %v54
  %v325 = vpop.f32.mrb[0].mxu0
  %v326 = vadd.f32 %v252, %v325
  %v327 = vpop.f32.mrb[0].mxu0
  %328 = vmatprep.mubr.f32.mxu0 0.0
  %329 = vmatmul.mubr.f32.gmra.mrb[0].mxu0 %v57
  %v330 = vpop.f32.mrb[0].mxu0
  %v331 = vadd.f32 %v252, %v330
  %v332 = vpop.f32.mrb[0].mxu0
  %333 = vmatprep.mubr.f32.mxu0 0.0
  %334 = vmatmul.mubr.f32.gmra.mrb[0].mxu0 %v60
  %v335 = vpop.f32.mrb[0].mxu0
  %v336 = vadd.f32 %v252, %v335
  %v337 = vpop.f32.mrb[0].mxu0
  %338 = vmatprep.mubr.f32.mxu0 0.0
  %339 = vmatmul.mubr.f32.gmra.mrb[0].mxu0 %v63
  %v340 = vpop.f32.mrb[0].mxu0
  %v341 = vadd.f32 %v252, %v340
  %v342 = vpop.f32.mrb[0].mxu0
  %343 = vmatprep.mubr.f32.mxu0 0.0
  %344 = vmatmul.mubr.f32.gmra.mrb[0].mxu0 %v66
  %v345 = vpop.f32.mrb[0].mxu0
  %v346 = vadd.f32 %v252, %v345
  %v347 = vpop.f32.mrb[0].mxu0
  %348 = vmatprep.mubr.f32.mxu0 0.0
  %349 = vmatmul.mubr.f32.gmra.mrb[0].mxu0 %v69
  %v350 = vpop.f32.mrb[0].mxu0
  %v351 = vadd.f32 %v252, %v350
  %v352 = vpop.f32.mrb[0].mxu0
  %353 = vmatprep.mubr.f32.mxu0 0.0
  %354 = vmatmul.mubr.f32.gmra.mrb[0].mxu0 %v72
  %v355 = vpop.f32.mrb[0].mxu0
  %v356 = vadd.f32 %v252, %v355
  %v357 = vpop.f32.mrb[0].mxu0
  %358 = vmatprep.mubr.f32.mxu0 0.0
  %359 = vmatmul.mubr.f32.gmra.mrb[0].mxu0 %v75
  %v360 = vpop.f32.mrb[0].mxu0
  %v361 = vadd.f32 %v252, %v360
  %v362 = vpop.f32.mrb[0].mxu0
  %363 = vmatprep.mubr.f32.mxu0 0.0
  %364 = vmatmul.mubr.f32.gmra.mrb[0].mxu0 %v78
  %v365 = vpop.f32.mrb[0].mxu0
  %v366 = vadd.f32 %v252, %v365
  %v367 = vpop.f32.mrb[0].mxu0
  %368 = vmatprep.mubr.f32.mxu0 0.0
  %369 = vmatmul.mubr.f32.gmra.mrb[0].mxu0 %v81
  %v370 = vpop.f32.mrb[0].mxu0
  %v371 = vadd.f32 %v252, %v370
  %v372 = vpop.f32.mrb[0].mxu0
  %373 = vmatprep.mubr.f32.mxu0 0.0
  %374 = vmatmul.mubr.f32.gmra.mrb[0].mxu0 %v84
  %v375 = vpop.f32.mrb[0].mxu0
  %v376 = vadd.f32 %v252, %v375
  %v377 = vpop.f32.mrb[0].mxu0
  %378 = vmatprep.mubr.f32.mxu0 0.0
  %379 = vmatmul.mubr.f32.gmra.mrb[0].mxu0 %v87
  %v380 = vpop.f32.mrb[0].mxu0
  %v381 = vadd.f32 %v252, %v380
  %v382 = vpop.f32.mrb[0].mxu0
  %383 = vmatprep.mubr.f32.mxu0 0.0
  %384 = vmatmul.mubr.f32.gmra.mrb[0].mxu0 %v90
  %v385 = vpop.f32.mrb[0].mxu0
  %v386 = vadd.f32 %v252, %v385
  %v387 = vpop.f32.mrb[0].mxu0
  %388 = vmatprep.mubr.f32.mxu0 0.0
  %389 = vmatmul.mubr.f32.gmra.mrb[0].mxu0 %v93
  %v390 = vpop.f32.mrb[0].mxu0
  %v391 = vadd.f32 %v252, %v390
  %v392 = vpop.f32.mrb[0].mxu0
  %393 = vmatprep.mubr.f32.mxu0 0.0
  %394 = vmatmul.mubr.f32.gmra.mrb[0].mxu0 %v96
  %v395 = vpop.f32.mrb[0].mxu0
  %v396 = vadd.f32 %v252, %v395
  %v397 = vpop.f32.mrb[0].mxu0
  %398 = vdwg.mxu0
  %v399 = vmul.f32 %v165, 0.5
  %v400 = vmul.f32 %v170, 0.5
  %v401 = vmul.f32 %v175, 0.5
  %v402 = vmul.f32 %v180, 0.5
  %v403 = vmul.f32 %v185, 0.5
  %v404 = vmul.f32 %v190, 0.5
  %v405 = vmul.f32 %v195, 0.5
  %v406 = vmul.f32 %v200, 0.5
  %v407 = vmul.f32 %v205, 0.5
  %v408 = vmul.f32 %v210, 0.5
  %v409 = vmul.f32 %v215, 0.5
  %v410 = vmul.f32 %v220, 0.5
  %v411 = vmul.f32 %v225, 0.5
  %v412 = vmul.f32 %v230, 0.5
  %v413 = vmul.f32 %v235, 0.5
  %v414 = vmul.f32 %v240, 0.5
  %v415 = vmul.f32 %v165, 0.70710677
  %v416 = vmul.f32 %v170, 0.70710677
  %v417 = vmul.f32 %v175, 0.70710677
  %v418 = vmul.f32 %v180, 0.70710677
  %v419 = vmul.f32 %v185, 0.70710677
  %v420 = vmul.f32 %v190, 0.70710677
  %v421 = vmul.f32 %v195, 0.70710677
  %v422 = vmul.f32 %v200, 0.70710677
  %v423 = vmul.f32 %v205, 0.70710677
  %v424 = vmul.f32 %v210, 0.70710677
  %v425 = vmul.f32 %v215, 0.70710677
  %v426 = vmul.f32 %v220, 0.70710677
  %v427 = vmul.f32 %v225, 0.70710677
  %v428 = vmul.f32 %v230, 0.70710677
  %v429 = vmul.f32 %v235, 0.70710677
  %v430 = vmul.f32 %v240, 0.70710677
  %v431 = vand.u32 2147483647, %v415
  %v432 = vand.u32 2147483647, %v416
  %v433 = vand.u32 2147483647, %v417
  %v434 = vand.u32 2147483647, %v418
  %v435 = vand.u32 2147483647, %v419
  %v436 = vand.u32 2147483647, %v420
  %v437 = vand.u32 2147483647, %v421
  %v438 = vand.u32 2147483647, %v422
  %v439 = vand.u32 2147483647, %v423
  %v440 = vand.u32 2147483647, %v424
  %v441 = vand.u32 2147483647, %v425
  %v442 = vand.u32 2147483647, %v426
  %v443 = vand.u32 2147483647, %v427
  %v444 = vand.u32 2147483647, %v428
  %v445 = vand.u32 2147483647, %v429
  %v446 = vand.u32 2147483647, %v430
  %v447 = vmul.f32 %v431, 0.3275911
  %v448 = vmul.f32 %v432, 0.3275911
  %v449 = vmul.f32 %v433, 0.3275911
  %v450 = vmul.f32 %v434, 0.3275911
  %v451 = vmul.f32 %v435, 0.3275911
  %v452 = vmul.f32 %v436, 0.3275911
  %v453 = vmul.f32 %v437, 0.3275911
  %v454 = vmul.f32 %v438, 0.3275911
  %v455 = vmul.f32 %v439, 0.3275911
  %v456 = vmul.f32 %v440, 0.3275911
  %v457 = vmul.f32 %v441, 0.3275911
  %v458 = vmul.f32 %v442, 0.3275911
  %v459 = vmul.f32 %v443, 0.3275911
  %v460 = vmul.f32 %v444, 0.3275911
  %v461 = vmul.f32 %v445, 0.3275911
  %v462 = vmul.f32 %v446, 0.3275911
  %v463 = vadd.f32 %v447, 1.0
  %v464 = vadd.f32 %v448, 1.0
  %v465 = vadd.f32 %v449, 1.0
  %v466 = vadd.f32 %v450, 1.0
  %v467 = vadd.f32 %v451, 1.0
  %v468 = vadd.f32 %v452, 1.0
  %v469 = vadd.f32 %v453, 1.0
  %v470 = vadd.f32 %v454, 1.0
  %v471 = vadd.f32 %v455, 1.0
  %v472 = vadd.f32 %v456, 1.0
  %v473 = vadd.f32 %v457, 1.0
  %v474 = vadd.f32 %v458, 1.0
  %v475 = vadd.f32 %v459, 1.0
  %v476 = vadd.f32 %v460, 1.0
  %v477 = vadd.f32 %v461, 1.0
  %v478 = vadd.f32 %v462, 1.0
  %v479 = vrcp.pop %v463
  %v480 = vmul.f32 1.0, %v479
  %v481 = vrcp.pop %v464
  %v482 = vmul.f32 1.0, %v481
  %v483 = vrcp.pop %v465
  %v484 = vmul.f32 1.0, %v483
  %v485 = vrcp.pop %v466
  %v486 = vmul.f32 1.0, %v485
  %v487 = vrcp.pop %v467
  %v488 = vmul.f32 1.0, %v487
  %v489 = vrcp.pop %v468
  %v490 = vmul.f32 1.0, %v489
  %v491 = vrcp.pop %v469
  %v492 = vmul.f32 1.0, %v491
  %v493 = vrcp.pop %v470
  %v494 = vmul.f32 1.0, %v493
  %v495 = vrcp.pop %v471
  %v496 = vmul.f32 1.0, %v495
  %v497 = vrcp.pop %v472
  %v498 = vmul.f32 1.0, %v497
  %v499 = vrcp.pop %v473
  %v500 = vmul.f32 1.0, %v499
  %v501 = vrcp.pop %v474
  %v502 = vmul.f32 1.0, %v501
  %v503 = vrcp.pop %v475
  %v504 = vmul.f32 1.0, %v503
  %v505 = vrcp.pop %v476
  %v506 = vmul.f32 1.0, %v505
  %v507 = vrcp.pop %v477
  %v508 = vmul.f32 1.0, %v507
  %v509 = vrcp.pop %v478
  %v510 = vmul.f32 1.0, %v509
  %v511 = vmul.f32 %v480, 1.0614054
  %v512 = vmul.f32 %v482, 1.0614054
  %v513 = vmul.f32 %v484, 1.0614054
  %v514 = vmul.f32 %v486, 1.0614054
  %v515 = vmul.f32 %v488, 1.0614054
  %v516 = vmul.f32 %v490, 1.0614054
  %v517 = vmul.f32 %v492, 1.0614054
  %v518 = vmul.f32 %v494, 1.0614054
  %v519 = vmul.f32 %v496, 1.0614054
  %v520 = vmul.f32 %v498, 1.0614054
  %v521 = vmul.f32 %v500, 1.0614054
  %v522 = vmul.f32 %v502, 1.0614054
  %v523 = vmul.f32 %v504, 1.0614054
  %v524 = vmul.f32 %v506, 1.0614054
  %v525 = vmul.f32 %v508, 1.0614054
  %v526 = vmul.f32 %v510, 1.0614054
  %v527 = vadd.f32 %v511, -1.4531521
  %v528 = vadd.f32 %v512, -1.4531521
  %v529 = vadd.f32 %v513, -1.4531521
  %v530 = vadd.f32 %v514, -1.4531521
  %v531 = vadd.f32 %v515, -1.4531521
  %v532 = vadd.f32 %v516, -1.4531521
  %v533 = vadd.f32 %v517, -1.4531521
  %v534 = vadd.f32 %v518, -1.4531521
  %v535 = vadd.f32 %v519, -1.4531521
  %v536 = vadd.f32 %v520, -1.4531521
  %v537 = vadd.f32 %v521, -1.4531521
  %v538 = vadd.f32 %v522, -1.4531521
  %v539 = vadd.f32 %v523, -1.4531521
  %v540 = vadd.f32 %v524, -1.4531521
  %v541 = vadd.f32 %v525, -1.4531521
  %v542 = vadd.f32 %v526, -1.4531521
  %v543 = vmul.f32 %v527, %v480
  %v544 = vmul.f32 %v528, %v482
  %v545 = vmul.f32 %v529, %v484
  %v546 = vmul.f32 %v530, %v486
  %v547 = vmul.f32 %v531, %v488
  %v548 = vmul.f32 %v532, %v490
  %v549 = vmul.f32 %v533, %v492
  %v550 = vmul.f32 %v534, %v494
  %v551 = vmul.f32 %v535, %v496
  %v552 = vmul.f32 %v536, %v498
  %v553 = vmul.f32 %v537, %v500
  %v554 = vmul.f32 %v538, %v502
  %v555 = vmul.f32 %v539, %v504
  %v556 = vmul.f32 %v540, %v506
  %v557 = vmul.f32 %v541, %v508
  %v558 = vmul.f32 %v542, %v510
  %v559 = vadd.f32 %v543, 1.4214138
  %v560 = vadd.f32 %v544, 1.4214138
  %v561 = vadd.f32 %v545, 1.4214138
  %v562 = vadd.f32 %v546, 1.4214138
  %v563 = vadd.f32 %v547, 1.4214138
  %v564 = vadd.f32 %v548, 1.4214138
  %v565 = vadd.f32 %v549, 1.4214138
  %v566 = vadd.f32 %v550, 1.4214138
  %v567 = vadd.f32 %v551, 1.4214138
  %v568 = vadd.f32 %v552, 1.4214138
  %v569 = vadd.f32 %v553, 1.4214138
  %v570 = vadd.f32 %v554, 1.4214138
  %v571 = vadd.f32 %v555, 1.4214138
  %v572 = vadd.f32 %v556, 1.4214138
  %v573 = vadd.f32 %v557, 1.4214138
  %v574 = vadd.f32 %v558, 1.4214138
  %v575 = vmul.f32 %v559, %v480
  %v576 = vmul.f32 %v560, %v482
  %v577 = vmul.f32 %v561, %v484
  %v578 = vmul.f32 %v562, %v486
  %v579 = vmul.f32 %v563, %v488
  %v580 = vmul.f32 %v564, %v490
  %v581 = vmul.f32 %v565, %v492
  %v582 = vmul.f32 %v566, %v494
  %v583 = vmul.f32 %v567, %v496
  %v584 = vmul.f32 %v568, %v498
  %v585 = vmul.f32 %v569, %v500
  %v586 = vmul.f32 %v570, %v502
  %v587 = vmul.f32 %v571, %v504
  %v588 = vmul.f32 %v572, %v506
  %v589 = vmul.f32 %v573, %v508
  %v590 = vmul.f32 %v574, %v510
  %v591 = vadd.f32 %v575, -0.28449672
  %v592 = vadd.f32 %v576, -0.28449672
  %v593 = vadd.f32 %v577, -0.28449672
  %v594 = vadd.f32 %v578, -0.28449672
  %v595 = vadd.f32 %v579, -0.28449672
  %v596 = vadd.f32 %v580, -0.28449672
  %v597 = vadd.f32 %v581, -0.28449672
  %v598 = vadd.f32 %v582, -0.28449672
  %v599 = vadd.f32 %v583, -0.28449672
  %v600 = vadd.f32 %v584, -0.28449672
  %v601 = vadd.f32 %v585, -0.28449672
  %v602 = vadd.f32 %v586, -0.28449672
  %v603 = vadd.f32 %v587, -0.28449672
  %v604 = vadd.f32 %v588, -0.28449672
  %v605 = vadd.f32 %v589, -0.28449672
  %v606 = vadd.f32 %v590, -0.28449672
  %v607 = vmul.f32 %v591, %v480
  %v608 = vmul.f32 %v592, %v482
  %v609 = vmul.f32 %v593, %v484
  %v610 = vmul.f32 %v594, %v486
  %v611 = vmul.f32 %v595, %v488
  %v612 = vmul.f32 %v596, %v490
  %v613 = vmul.f32 %v597, %v492
  %v614 = vmul.f32 %v598, %v494
  %v615 = vmul.f32 %v599, %v496
  %v616 = vmul.f32 %v600, %v498
  %v617 = vmul.f32 %v601, %v500
  %v618 = vmul.f32 %v602, %v502
  %v619 = vmul.f32 %v603, %v504
  %v620 = vmul.f32 %v604, %v506
  %v621 = vmul.f32 %v605, %v508
  %v622 = vmul.f32 %v606, %v510
  %v623 = vadd.f32 %v607, 0.2548296
  %v624 = vadd.f32 %v608, 0.2548296
  %v625 = vadd.f32 %v609, 0.2548296
  %v626 = vadd.f32 %v610, 0.2548296
  %v627 = vadd.f32 %v611, 0.2548296
  %v628 = vadd.f32 %v612, 0.2548296
  %v629 = vadd.f32 %v613, 0.2548296
  %v630 = vadd.f32 %v614, 0.2548296
  %v631 = vadd.f32 %v615, 0.2548296
  %v632 = vadd.f32 %v616, 0.2548296
  %v633 = vadd.f32 %v617, 0.2548296
  %v634 = vadd.f32 %v618, 0.2548296
  %v635 = vadd.f32 %v619, 0.2548296
  %v636 = vadd.f32 %v620, 0.2548296
  %v637 = vadd.f32 %v621, 0.2548296
  %v638 = vadd.f32 %v622, 0.2548296
  %v639 = vmul.f32 %v623, %v480
  %v640 = vmul.f32 %v624, %v482
  %v641 = vmul.f32 %v625, %v484
  %v642 = vmul.f32 %v626, %v486
  %v643 = vmul.f32 %v627, %v488
  %v644 = vmul.f32 %v628, %v490
  %v645 = vmul.f32 %v629, %v492
  %v646 = vmul.f32 %v630, %v494
  %v647 = vmul.f32 %v631, %v496
  %v648 = vmul.f32 %v632, %v498
  %v649 = vmul.f32 %v633, %v500
  %v650 = vmul.f32 %v634, %v502
  %v651 = vmul.f32 %v635, %v504
  %v652 = vmul.f32 %v636, %v506
  %v653 = vmul.f32 %v637, %v508
  %v654 = vmul.f32 %v638, %v510
  %v655 = vsub.f32 0.0, %v431
  %v656 = vsub.f32 0.0, %v432
  %v657 = vsub.f32 0.0, %v433
  %v658 = vsub.f32 0.0, %v434
  %v659 = vsub.f32 0.0, %v435
  %v660 = vsub.f32 0.0, %v436
  %v661 = vsub.f32 0.0, %v437
  %v662 = vsub.f32 0.0, %v438
  %v663 = vsub.f32 0.0, %v439
  %v664 = vsub.f32 0.0, %v440
  %v665 = vsub.f32 0.0, %v441
  %v666 = vsub.f32 0.0, %v442
  %v667 = vsub.f32 0.0, %v443
  %v668 = vsub.f32 0.0, %v444
  %v669 = vsub.f32 0.0, %v445
  %v670 = vsub.f32 0.0, %v446
  %v671 = vmul.f32 %v655, %v431
  %v672 = vmul.f32 %v656, %v432
  %v673 = vmul.f32 %v657, %v433
  %v674 = vmul.f32 %v658, %v434
  %v675 = vmul.f32 %v659, %v435
  %v676 = vmul.f32 %v660, %v436
  %v677 = vmul.f32 %v661, %v437
  %v678 = vmul.f32 %v662, %v438
  %v679 = vmul.f32 %v663, %v439
  %v680 = vmul.f32 %v664, %v440
  %v681 = vmul.f32 %v665, %v441
  %v682 = vmul.f32 %v666, %v442
  %v683 = vmul.f32 %v667, %v443
  %v684 = vmul.f32 %v668, %v444
  %v685 = vmul.f32 %v669, %v445
  %v686 = vmul.f32 %v670, %v446
  %v687 = vmul.f32 %v671, 1.442695
  %v688 = vpow.pop %v687
  %v689 = vmul.f32 %v672, 1.442695
  %v690 = vpow.pop %v689
  %v691 = vmul.f32 %v673, 1.442695
  %v692 = vpow.pop %v691
  %v693 = vmul.f32 %v674, 1.442695
  %v694 = vpow.pop %v693
  %v695 = vmul.f32 %v675, 1.442695
  %v696 = vpow.pop %v695
  %v697 = vmul.f32 %v676, 1.442695
  %v698 = vpow.pop %v697
  %v699 = vmul.f32 %v677, 1.442695
  %v700 = vpow.pop %v699
  %v701 = vmul.f32 %v678, 1.442695
  %v702 = vpow.pop %v701
  %v703 = vmul.f32 %v679, 1.442695
  %v704 = vpow.pop %v703
  %v705 = vmul.f32 %v680, 1.442695
  %v706 = vpow.pop %v705
  %v707 = vmul.f32 %v681, 1.442695
  %v708 = vpow.pop %v707
  %v709 = vmul.f32 %v682, 1.442695
  %v710 = vpow.pop %v709
  %v711 = vmul.f32 %v683, 1.442695
  %v712 = vpow.pop %v711
  %v713 = vmul.f32 %v684, 1.442695
  %v714 = vpow.pop %v713
  %v715 = vmul.f32 %v685, 1.442695
  %v716 = vpow.pop %v715
  %v717 = vmul.f32 %v686, 1.442695
  %v718 = vpow.pop %v717
  %v719 = vmul.f32 %v639, %v688
  %v720 = vmul.f32 %v640, %v690
  %v721 = vmul.f32 %v641, %v692
  %v722 = vmul.f32 %v642, %v694
  %v723 = vmul.f32 %v643, %v696
  %v724 = vmul.f32 %v644, %v698
  %v725 = vmul.f32 %v645, %v700
  %v726 = vmul.f32 %v646, %v702
  %v727 = vmul.f32 %v647, %v704
  %v728 = vmul.f32 %v648, %v706
  %v729 = vmul.f32 %v649, %v708
  %v730 = vmul.f32 %v650, %v710
  %v731 = vmul.f32 %v651, %v712
  %v732 = vmul.f32 %v652, %v714
  %v733 = vmul.f32 %v653, %v716
  %v734 = vmul.f32 %v654, %v718
  %v735 = vsub.f32 1.0, %v719
  %v736 = vsub.f32 1.0, %v720
  %v737 = vsub.f32 1.0, %v721
  %v738 = vsub.f32 1.0, %v722
  %v739 = vsub.f32 1.0, %v723
  %v740 = vsub.f32 1.0, %v724
  %v741 = vsub.f32 1.0, %v725
  %v742 = vsub.f32 1.0, %v726
  %v743 = vsub.f32 1.0, %v727
  %v744 = vsub.f32 1.0, %v728
  %v745 = vsub.f32 1.0, %v729
  %v746 = vsub.f32 1.0, %v730
  %v747 = vsub.f32 1.0, %v731
  %v748 = vsub.f32 1.0, %v732
  %v749 = vsub.f32 1.0, %v733
  %v750 = vsub.f32 1.0, %v734
  %vm751 = vcmp.ge.f32.partialorder %v415, 0.0
  %vm752 = vcmp.ge.f32.partialorder %v416, 0.0
  %vm753 = vcmp.ge.f32.partialorder %v417, 0.0
  %vm754 = vcmp.ge.f32.partialorder %v418, 0.0
  %vm755 = vcmp.ge.f32.partialorder %v419, 0.0
  %vm756 = vcmp.ge.f32.partialorder %v420, 0.0
  %vm757 = vcmp.ge.f32.partialorder %v421, 0.0
  %vm758 = vcmp.ge.f32.partialorder %v422, 0.0
  %vm759 = vcmp.ge.f32.partialorder %v423, 0.0
  %vm760 = vcmp.ge.f32.partialorder %v424, 0.0
  %vm761 = vcmp.ge.f32.partialorder %v425, 0.0
  %vm762 = vcmp.ge.f32.partialorder %v426, 0.0
  %vm763 = vcmp.ge.f32.partialorder %v427, 0.0
  %vm764 = vcmp.ge.f32.partialorder %v428, 0.0
  %vm765 = vcmp.ge.f32.partialorder %v429, 0.0
  %vm766 = vcmp.ge.f32.partialorder %v430, 0.0
  %v767 = vsub.f32 0.0, %v735
  %v768 = vsub.f32 0.0, %v736
  %v769 = vsub.f32 0.0, %v737
  %v770 = vsub.f32 0.0, %v738
  %v771 = vsub.f32 0.0, %v739
  %v772 = vsub.f32 0.0, %v740
  %v773 = vsub.f32 0.0, %v741
  %v774 = vsub.f32 0.0, %v742
  %v775 = vsub.f32 0.0, %v743
  %v776 = vsub.f32 0.0, %v744
  %v777 = vsub.f32 0.0, %v745
  %v778 = vsub.f32 0.0, %v746
  %v779 = vsub.f32 0.0, %v747
  %v780 = vsub.f32 0.0, %v748
  %v781 = vsub.f32 0.0, %v749
  %v782 = vsub.f32 0.0, %v750
  %v783 = vsel %vm751, %v735, %v767
  %v784 = vsel %vm752, %v736, %v768
  %v785 = vsel %vm753, %v737, %v769
  %v786 = vsel %vm754, %v738, %v770
  %v787 = vsel %vm755, %v739, %v771
  %v788 = vsel %vm756, %v740, %v772
  %v789 = vsel %vm757, %v741, %v773
  %v790 = vsel %vm758, %v742, %v774
  %v791 = vsel %vm759, %v743, %v775
  %v792 = vsel %vm760, %v744, %v776
  %v793 = vsel %vm761, %v745, %v777
  %v794 = vsel %vm762, %v746, %v778
  %v795 = vsel %vm763, %v747, %v779
  %v796 = vsel %vm764, %v748, %v780
  %v797 = vsel %vm765, %v749, %v781
  %v798 = vsel %vm766, %v750, %v782
  %v799 = vadd.f32 %v783, 1.0
  %v800 = vadd.f32 %v784, 1.0
  %v801 = vadd.f32 %v785, 1.0
  %v802 = vadd.f32 %v786, 1.0
  %v803 = vadd.f32 %v787, 1.0
  %v804 = vadd.f32 %v788, 1.0
  %v805 = vadd.f32 %v789, 1.0
  %v806 = vadd.f32 %v790, 1.0
  %v807 = vadd.f32 %v791, 1.0
  %v808 = vadd.f32 %v792, 1.0
  %v809 = vadd.f32 %v793, 1.0
  %v810 = vadd.f32 %v794, 1.0
  %v811 = vadd.f32 %v795, 1.0
  %v812 = vadd.f32 %v796, 1.0
  %v813 = vadd.f32 %v797, 1.0
  %v814 = vadd.f32 %v798, 1.0
  %v815 = vmul.f32 %v399, %v799
  %v816 = vmul.f32 %v400, %v800
  %v817 = vmul.f32 %v401, %v801
  %v818 = vmul.f32 %v402, %v802
  %v819 = vmul.f32 %v403, %v803
  %v820 = vmul.f32 %v404, %v804
  %v821 = vmul.f32 %v405, %v805
  %v822 = vmul.f32 %v406, %v806
  %v823 = vmul.f32 %v407, %v807
  %v824 = vmul.f32 %v408, %v808
  %v825 = vmul.f32 %v409, %v809
  %v826 = vmul.f32 %v410, %v810
  %v827 = vmul.f32 %v411, %v811
  %v828 = vmul.f32 %v412, %v812
  %v829 = vmul.f32 %v413, %v813
  %v830 = vmul.f32 %v414, %v814
  %v831 = vmul.f32 %v321, 0.5
  %v832 = vmul.f32 %v326, 0.5
  %v833 = vmul.f32 %v331, 0.5
  %v834 = vmul.f32 %v336, 0.5
  %v835 = vmul.f32 %v341, 0.5
  %v836 = vmul.f32 %v346, 0.5
  %v837 = vmul.f32 %v351, 0.5
  %v838 = vmul.f32 %v356, 0.5
  %v839 = vmul.f32 %v361, 0.5
  %v840 = vmul.f32 %v366, 0.5
  %v841 = vmul.f32 %v371, 0.5
  %v842 = vmul.f32 %v376, 0.5
  %v843 = vmul.f32 %v381, 0.5
  %v844 = vmul.f32 %v386, 0.5
  %v845 = vmul.f32 %v391, 0.5
  %v846 = vmul.f32 %v396, 0.5
  %v847 = vmul.f32 %v321, 0.70710677
  %v848 = vmul.f32 %v326, 0.70710677
  %v849 = vmul.f32 %v331, 0.70710677
  %v850 = vmul.f32 %v336, 0.70710677
  %v851 = vmul.f32 %v341, 0.70710677
  %v852 = vmul.f32 %v346, 0.70710677
  %v853 = vmul.f32 %v351, 0.70710677
  %v854 = vmul.f32 %v356, 0.70710677
  %v855 = vmul.f32 %v361, 0.70710677
  %v856 = vmul.f32 %v366, 0.70710677
  %v857 = vmul.f32 %v371, 0.70710677
  %v858 = vmul.f32 %v376, 0.70710677
  %v859 = vmul.f32 %v381, 0.70710677
  %v860 = vmul.f32 %v386, 0.70710677
  %v861 = vmul.f32 %v391, 0.70710677
  %v862 = vmul.f32 %v396, 0.70710677
  %v863 = vand.u32 2147483647, %v847
  %v864 = vand.u32 2147483647, %v848
  %v865 = vand.u32 2147483647, %v849
  %v866 = vand.u32 2147483647, %v850
  %v867 = vand.u32 2147483647, %v851
  %v868 = vand.u32 2147483647, %v852
  %v869 = vand.u32 2147483647, %v853
  %v870 = vand.u32 2147483647, %v854
  %v871 = vand.u32 2147483647, %v855
  %v872 = vand.u32 2147483647, %v856
  %v873 = vand.u32 2147483647, %v857
  %v874 = vand.u32 2147483647, %v858
  %v875 = vand.u32 2147483647, %v859
  %v876 = vand.u32 2147483647, %v860
  %v877 = vand.u32 2147483647, %v861
  %v878 = vand.u32 2147483647, %v862
  %v879 = vmul.f32 %v863, 0.3275911
  %v880 = vmul.f32 %v864, 0.3275911
  %v881 = vmul.f32 %v865, 0.3275911
  %v882 = vmul.f32 %v866, 0.3275911
  %v883 = vmul.f32 %v867, 0.3275911
  %v884 = vmul.f32 %v868, 0.3275911
  %v885 = vmul.f32 %v869, 0.3275911
  %v886 = vmul.f32 %v870, 0.3275911
  %v887 = vmul.f32 %v871, 0.3275911
  %v888 = vmul.f32 %v872, 0.3275911
  %v889 = vmul.f32 %v873, 0.3275911
  %v890 = vmul.f32 %v874, 0.3275911
  %v891 = vmul.f32 %v875, 0.3275911
  %v892 = vmul.f32 %v876, 0.3275911
  %v893 = vmul.f32 %v877, 0.3275911
  %v894 = vmul.f32 %v878, 0.3275911
  %v895 = vadd.f32 %v879, 1.0
  %v896 = vadd.f32 %v880, 1.0
  %v897 = vadd.f32 %v881, 1.0
  %v898 = vadd.f32 %v882, 1.0
  %v899 = vadd.f32 %v883, 1.0
  %v900 = vadd.f32 %v884, 1.0
  %v901 = vadd.f32 %v885, 1.0
  %v902 = vadd.f32 %v886, 1.0
  %v903 = vadd.f32 %v887, 1.0
  %v904 = vadd.f32 %v888, 1.0
  %v905 = vadd.f32 %v889, 1.0
  %v906 = vadd.f32 %v890, 1.0
  %v907 = vadd.f32 %v891, 1.0
  %v908 = vadd.f32 %v892, 1.0
  %v909 = vadd.f32 %v893, 1.0
  %v910 = vadd.f32 %v894, 1.0
  %v911 = vrcp.pop %v895
  %v912 = vmul.f32 1.0, %v911
  %v913 = vrcp.pop %v896
  %v914 = vmul.f32 1.0, %v913
  %v915 = vrcp.pop %v897
  %v916 = vmul.f32 1.0, %v915
  %v917 = vrcp.pop %v898
  %v918 = vmul.f32 1.0, %v917
  %v919 = vrcp.pop %v899
  %v920 = vmul.f32 1.0, %v919
  %v921 = vrcp.pop %v900
  %v922 = vmul.f32 1.0, %v921
  %v923 = vrcp.pop %v901
  %v924 = vmul.f32 1.0, %v923
  %v925 = vrcp.pop %v902
  %v926 = vmul.f32 1.0, %v925
  %v927 = vrcp.pop %v903
  %v928 = vmul.f32 1.0, %v927
  %v929 = vrcp.pop %v904
  %v930 = vmul.f32 1.0, %v929
  %v931 = vrcp.pop %v905
  %v932 = vmul.f32 1.0, %v931
  %v933 = vrcp.pop %v906
  %v934 = vmul.f32 1.0, %v933
  %v935 = vrcp.pop %v907
  %v936 = vmul.f32 1.0, %v935
  %v937 = vrcp.pop %v908
  %v938 = vmul.f32 1.0, %v937
  %v939 = vrcp.pop %v909
  %v940 = vmul.f32 1.0, %v939
  %v941 = vrcp.pop %v910
  %v942 = vmul.f32 1.0, %v941
  %v943 = vmul.f32 %v912, 1.0614054
  %v944 = vmul.f32 %v914, 1.0614054
  %v945 = vmul.f32 %v916, 1.0614054
  %v946 = vmul.f32 %v918, 1.0614054
  %v947 = vmul.f32 %v920, 1.0614054
  %v948 = vmul.f32 %v922, 1.0614054
  %v949 = vmul.f32 %v924, 1.0614054
  %v950 = vmul.f32 %v926, 1.0614054
  %v951 = vmul.f32 %v928, 1.0614054
  %v952 = vmul.f32 %v930, 1.0614054
  %v953 = vmul.f32 %v932, 1.0614054
  %v954 = vmul.f32 %v934, 1.0614054
  %v955 = vmul.f32 %v936, 1.0614054
  %v956 = vmul.f32 %v938, 1.0614054
  %v957 = vmul.f32 %v940, 1.0614054
  %v958 = vmul.f32 %v942, 1.0614054
  %v959 = vadd.f32 %v943, -1.4531521
  %v960 = vadd.f32 %v944, -1.4531521
  %v961 = vadd.f32 %v945, -1.4531521
  %v962 = vadd.f32 %v946, -1.4531521
  %v963 = vadd.f32 %v947, -1.4531521
  %v964 = vadd.f32 %v948, -1.4531521
  %v965 = vadd.f32 %v949, -1.4531521
  %v966 = vadd.f32 %v950, -1.4531521
  %v967 = vadd.f32 %v951, -1.4531521
  %v968 = vadd.f32 %v952, -1.4531521
  %v969 = vadd.f32 %v953, -1.4531521
  %v970 = vadd.f32 %v954, -1.4531521
  %v971 = vadd.f32 %v955, -1.4531521
  %v972 = vadd.f32 %v956, -1.4531521
  %v973 = vadd.f32 %v957, -1.4531521
  %v974 = vadd.f32 %v958, -1.4531521
  %v975 = vmul.f32 %v959, %v912
  %v976 = vmul.f32 %v960, %v914
  %v977 = vmul.f32 %v961, %v916
  %v978 = vmul.f32 %v962, %v918
  %v979 = vmul.f32 %v963, %v920
  %v980 = vmul.f32 %v964, %v922
  %v981 = vmul.f32 %v965, %v924
  %v982 = vmul.f32 %v966, %v926
  %v983 = vmul.f32 %v967, %v928
  %v984 = vmul.f32 %v968, %v930
  %v985 = vmul.f32 %v969, %v932
  %v986 = vmul.f32 %v970, %v934
  %v987 = vmul.f32 %v971, %v936
  %v988 = vmul.f32 %v972, %v938
  %v989 = vmul.f32 %v973, %v940
  %v990 = vmul.f32 %v974, %v942
  %v991 = vadd.f32 %v975, 1.4214138
  %v992 = vadd.f32 %v976, 1.4214138
  %v993 = vadd.f32 %v977, 1.4214138
  %v994 = vadd.f32 %v978, 1.4214138
  %v995 = vadd.f32 %v979, 1.4214138
  %v996 = vadd.f32 %v980, 1.4214138
  %v997 = vadd.f32 %v981, 1.4214138
  %v998 = vadd.f32 %v982, 1.4214138
  %v999 = vadd.f32 %v983, 1.4214138
  %v1000 = vadd.f32 %v984, 1.4214138
  %v1001 = vadd.f32 %v985, 1.4214138
  %v1002 = vadd.f32 %v986, 1.4214138
  %v1003 = vadd.f32 %v987, 1.4214138
  %v1004 = vadd.f32 %v988, 1.4214138
  %v1005 = vadd.f32 %v989, 1.4214138
  %v1006 = vadd.f32 %v990, 1.4214138
  %v1007 = vmul.f32 %v991, %v912
  %v1008 = vmul.f32 %v992, %v914
  %v1009 = vmul.f32 %v993, %v916
  %v1010 = vmul.f32 %v994, %v918
  %v1011 = vmul.f32 %v995, %v920
  %v1012 = vmul.f32 %v996, %v922
  %v1013 = vmul.f32 %v997, %v924
  %v1014 = vmul.f32 %v998, %v926
  %v1015 = vmul.f32 %v999, %v928
  %v1016 = vmul.f32 %v1000, %v930
  %v1017 = vmul.f32 %v1001, %v932
  %v1018 = vmul.f32 %v1002, %v934
  %v1019 = vmul.f32 %v1003, %v936
  %v1020 = vmul.f32 %v1004, %v938
  %v1021 = vmul.f32 %v1005, %v940
  %v1022 = vmul.f32 %v1006, %v942
  %v1023 = vadd.f32 %v1007, -0.28449672
  %v1024 = vadd.f32 %v1008, -0.28449672
  %v1025 = vadd.f32 %v1009, -0.28449672
  %v1026 = vadd.f32 %v1010, -0.28449672
  %v1027 = vadd.f32 %v1011, -0.28449672
  %v1028 = vadd.f32 %v1012, -0.28449672
  %v1029 = vadd.f32 %v1013, -0.28449672
  %v1030 = vadd.f32 %v1014, -0.28449672
  %v1031 = vadd.f32 %v1015, -0.28449672
  %v1032 = vadd.f32 %v1016, -0.28449672
  %v1033 = vadd.f32 %v1017, -0.28449672
  %v1034 = vadd.f32 %v1018, -0.28449672
  %v1035 = vadd.f32 %v1019, -0.28449672
  %v1036 = vadd.f32 %v1020, -0.28449672
  %v1037 = vadd.f32 %v1021, -0.28449672
  %v1038 = vadd.f32 %v1022, -0.28449672
  %v1039 = vmul.f32 %v1023, %v912
  %v1040 = vmul.f32 %v1024, %v914
  %v1041 = vmul.f32 %v1025, %v916
  %v1042 = vmul.f32 %v1026, %v918
  %v1043 = vmul.f32 %v1027, %v920
  %v1044 = vmul.f32 %v1028, %v922
  %v1045 = vmul.f32 %v1029, %v924
  %v1046 = vmul.f32 %v1030, %v926
  %v1047 = vmul.f32 %v1031, %v928
  %v1048 = vmul.f32 %v1032, %v930
  %v1049 = vmul.f32 %v1033, %v932
  %v1050 = vmul.f32 %v1034, %v934
  %v1051 = vmul.f32 %v1035, %v936
  %v1052 = vmul.f32 %v1036, %v938
  %v1053 = vmul.f32 %v1037, %v940
  %v1054 = vmul.f32 %v1038, %v942
  %v1055 = vadd.f32 %v1039, 0.2548296
  %v1056 = vadd.f32 %v1040, 0.2548296
  %v1057 = vadd.f32 %v1041, 0.2548296
  %v1058 = vadd.f32 %v1042, 0.2548296
  %v1059 = vadd.f32 %v1043, 0.2548296
  %v1060 = vadd.f32 %v1044, 0.2548296
  %v1061 = vadd.f32 %v1045, 0.2548296
  %v1062 = vadd.f32 %v1046, 0.2548296
  %v1063 = vadd.f32 %v1047, 0.2548296
  %v1064 = vadd.f32 %v1048, 0.2548296
  %v1065 = vadd.f32 %v1049, 0.2548296
  %v1066 = vadd.f32 %v1050, 0.2548296
  %v1067 = vadd.f32 %v1051, 0.2548296
  %v1068 = vadd.f32 %v1052, 0.2548296
  %v1069 = vadd.f32 %v1053, 0.2548296
  %v1070 = vadd.f32 %v1054, 0.2548296
  %v1071 = vmul.f32 %v1055, %v912
  %v1072 = vmul.f32 %v1056, %v914
  %v1073 = vmul.f32 %v1057, %v916
  %v1074 = vmul.f32 %v1058, %v918
  %v1075 = vmul.f32 %v1059, %v920
  %v1076 = vmul.f32 %v1060, %v922
  %v1077 = vmul.f32 %v1061, %v924
  %v1078 = vmul.f32 %v1062, %v926
  %v1079 = vmul.f32 %v1063, %v928
  %v1080 = vmul.f32 %v1064, %v930
  %v1081 = vmul.f32 %v1065, %v932
  %v1082 = vmul.f32 %v1066, %v934
  %v1083 = vmul.f32 %v1067, %v936
  %v1084 = vmul.f32 %v1068, %v938
  %v1085 = vmul.f32 %v1069, %v940
  %v1086 = vmul.f32 %v1070, %v942
  %v1087 = vsub.f32 0.0, %v863
  %v1088 = vsub.f32 0.0, %v864
  %v1089 = vsub.f32 0.0, %v865
  %v1090 = vsub.f32 0.0, %v866
  %v1091 = vsub.f32 0.0, %v867
  %v1092 = vsub.f32 0.0, %v868
  %v1093 = vsub.f32 0.0, %v869
  %v1094 = vsub.f32 0.0, %v870
  %v1095 = vsub.f32 0.0, %v871
  %v1096 = vsub.f32 0.0, %v872
  %v1097 = vsub.f32 0.0, %v873
  %v1098 = vsub.f32 0.0, %v874
  %v1099 = vsub.f32 0.0, %v875
  %v1100 = vsub.f32 0.0, %v876
  %v1101 = vsub.f32 0.0, %v877
  %v1102 = vsub.f32 0.0, %v878
  %v1103 = vmul.f32 %v1087, %v863
  %v1104 = vmul.f32 %v1088, %v864
  %v1105 = vmul.f32 %v1089, %v865
  %v1106 = vmul.f32 %v1090, %v866
  %v1107 = vmul.f32 %v1091, %v867
  %v1108 = vmul.f32 %v1092, %v868
  %v1109 = vmul.f32 %v1093, %v869
  %v1110 = vmul.f32 %v1094, %v870
  %v1111 = vmul.f32 %v1095, %v871
  %v1112 = vmul.f32 %v1096, %v872
  %v1113 = vmul.f32 %v1097, %v873
  %v1114 = vmul.f32 %v1098, %v874
  %v1115 = vmul.f32 %v1099, %v875
  %v1116 = vmul.f32 %v1100, %v876
  %v1117 = vmul.f32 %v1101, %v877
  %v1118 = vmul.f32 %v1102, %v878
  %v1119 = vmul.f32 %v1103, 1.442695
  %v1120 = vpow.pop %v1119
  %v1121 = vmul.f32 %v1104, 1.442695
  %v1122 = vpow.pop %v1121
  %v1123 = vmul.f32 %v1105, 1.442695
  %v1124 = vpow.pop %v1123
  %v1125 = vmul.f32 %v1106, 1.442695
  %v1126 = vpow.pop %v1125
  %v1127 = vmul.f32 %v1107, 1.442695
  %v1128 = vpow.pop %v1127
  %v1129 = vmul.f32 %v1108, 1.442695
  %v1130 = vpow.pop %v1129
  %v1131 = vmul.f32 %v1109, 1.442695
  %v1132 = vpow.pop %v1131
  %v1133 = vmul.f32 %v1110, 1.442695
  %v1134 = vpow.pop %v1133
  %v1135 = vmul.f32 %v1111, 1.442695
  %v1136 = vpow.pop %v1135
  %v1137 = vmul.f32 %v1112, 1.442695
  %v1138 = vpow.pop %v1137
  %v1139 = vmul.f32 %v1113, 1.442695
  %v1140 = vpow.pop %v1139
  %v1141 = vmul.f32 %v1114, 1.442695
  %v1142 = vpow.pop %v1141
  %v1143 = vmul.f32 %v1115, 1.442695
  %v1144 = vpow.pop %v1143
  %v1145 = vmul.f32 %v1116, 1.442695
  %v1146 = vpow.pop %v1145
  %v1147 = vmul.f32 %v1117, 1.442695
  %v1148 = vpow.pop %v1147
  %v1149 = vmul.f32 %v1118, 1.442695
  %v1150 = vpow.pop %v1149
  %v1151 = vmul.f32 %v1071, %v1120
  %v1152 = vmul.f32 %v1072, %v1122
  %v1153 = vmul.f32 %v1073, %v1124
  %v1154 = vmul.f32 %v1074, %v1126
  %v1155 = vmul.f32 %v1075, %v1128
  %v1156 = vmul.f32 %v1076, %v1130
  %v1157 = vmul.f32 %v1077, %v1132
  %v1158 = vmul.f32 %v1078, %v1134
  %v1159 = vmul.f32 %v1079, %v1136
  %v1160 = vmul.f32 %v1080, %v1138
  %v1161 = vmul.f32 %v1081, %v1140
  %v1162 = vmul.f32 %v1082, %v1142
  %v1163 = vmul.f32 %v1083, %v1144
  %v1164 = vmul.f32 %v1084, %v1146
  %v1165 = vmul.f32 %v1085, %v1148
  %v1166 = vmul.f32 %v1086, %v1150
  %v1167 = vsub.f32 1.0, %v1151
  %v1168 = vsub.f32 1.0, %v1152
  %v1169 = vsub.f32 1.0, %v1153
  %v1170 = vsub.f32 1.0, %v1154
  %v1171 = vsub.f32 1.0, %v1155
  %v1172 = vsub.f32 1.0, %v1156
  %v1173 = vsub.f32 1.0, %v1157
  %v1174 = vsub.f32 1.0, %v1158
  %v1175 = vsub.f32 1.0, %v1159
  %v1176 = vsub.f32 1.0, %v1160
  %v1177 = vsub.f32 1.0, %v1161
  %v1178 = vsub.f32 1.0, %v1162
  %v1179 = vsub.f32 1.0, %v1163
  %v1180 = vsub.f32 1.0, %v1164
  %v1181 = vsub.f32 1.0, %v1165
  %v1182 = vsub.f32 1.0, %v1166
  %vm1183 = vcmp.ge.f32.partialorder %v847, 0.0
  %vm1184 = vcmp.ge.f32.partialorder %v848, 0.0
  %vm1185 = vcmp.ge.f32.partialorder %v849, 0.0
  %vm1186 = vcmp.ge.f32.partialorder %v850, 0.0
  %vm1187 = vcmp.ge.f32.partialorder %v851, 0.0
  %vm1188 = vcmp.ge.f32.partialorder %v852, 0.0
  %vm1189 = vcmp.ge.f32.partialorder %v853, 0.0
  %vm1190 = vcmp.ge.f32.partialorder %v854, 0.0
  %vm1191 = vcmp.ge.f32.partialorder %v855, 0.0
  %vm1192 = vcmp.ge.f32.partialorder %v856, 0.0
  %vm1193 = vcmp.ge.f32.partialorder %v857, 0.0
  %vm1194 = vcmp.ge.f32.partialorder %v858, 0.0
  %vm1195 = vcmp.ge.f32.partialorder %v859, 0.0
  %vm1196 = vcmp.ge.f32.partialorder %v860, 0.0
  %vm1197 = vcmp.ge.f32.partialorder %v861, 0.0
  %vm1198 = vcmp.ge.f32.partialorder %v862, 0.0
  %v1199 = vsub.f32 0.0, %v1167
  %v1200 = vsub.f32 0.0, %v1168
  %v1201 = vsub.f32 0.0, %v1169
  %v1202 = vsub.f32 0.0, %v1170
  %v1203 = vsub.f32 0.0, %v1171
  %v1204 = vsub.f32 0.0, %v1172
  %v1205 = vsub.f32 0.0, %v1173
  %v1206 = vsub.f32 0.0, %v1174
  %v1207 = vsub.f32 0.0, %v1175
  %v1208 = vsub.f32 0.0, %v1176
  %v1209 = vsub.f32 0.0, %v1177
  %v1210 = vsub.f32 0.0, %v1178
  %v1211 = vsub.f32 0.0, %v1179
  %v1212 = vsub.f32 0.0, %v1180
  %v1213 = vsub.f32 0.0, %v1181
  %v1214 = vsub.f32 0.0, %v1182
  %v1215 = vsel %vm1183, %v1167, %v1199
  %v1216 = vsel %vm1184, %v1168, %v1200
  %v1217 = vsel %vm1185, %v1169, %v1201
  %v1218 = vsel %vm1186, %v1170, %v1202
  %v1219 = vsel %vm1187, %v1171, %v1203
  %v1220 = vsel %vm1188, %v1172, %v1204
  %v1221 = vsel %vm1189, %v1173, %v1205
  %v1222 = vsel %vm1190, %v1174, %v1206
  %v1223 = vsel %vm1191, %v1175, %v1207
  %v1224 = vsel %vm1192, %v1176, %v1208
  %v1225 = vsel %vm1193, %v1177, %v1209
  %v1226 = vsel %vm1194, %v1178, %v1210
  %v1227 = vsel %vm1195, %v1179, %v1211
  %v1228 = vsel %vm1196, %v1180, %v1212
  %v1229 = vsel %vm1197, %v1181, %v1213
  %v1230 = vsel %vm1198, %v1182, %v1214
  %v1231 = vadd.f32 %v1215, 1.0
  %v1232 = vadd.f32 %v1216, 1.0
  %v1233 = vadd.f32 %v1217, 1.0
  %v1234 = vadd.f32 %v1218, 1.0
  %v1235 = vadd.f32 %v1219, 1.0
  %v1236 = vadd.f32 %v1220, 1.0
  %v1237 = vadd.f32 %v1221, 1.0
  %v1238 = vadd.f32 %v1222, 1.0
  %v1239 = vadd.f32 %v1223, 1.0
  %v1240 = vadd.f32 %v1224, 1.0
  %v1241 = vadd.f32 %v1225, 1.0
  %v1242 = vadd.f32 %v1226, 1.0
  %v1243 = vadd.f32 %v1227, 1.0
  %v1244 = vadd.f32 %v1228, 1.0
  %v1245 = vadd.f32 %v1229, 1.0
  %v1246 = vadd.f32 %v1230, 1.0
  %v1247 = vmul.f32 %v831, %v1231
  %v1248 = vmul.f32 %v832, %v1232
  %v1249 = vmul.f32 %v833, %v1233
  %v1250 = vmul.f32 %v834, %v1234
  %v1251 = vmul.f32 %v835, %v1235
  %v1252 = vmul.f32 %v836, %v1236
  %v1253 = vmul.f32 %v837, %v1237
  %v1254 = vmul.f32 %v838, %v1238
  %v1255 = vmul.f32 %v839, %v1239
  %v1256 = vmul.f32 %v840, %v1240
  %v1257 = vmul.f32 %v841, %v1241
  %v1258 = vmul.f32 %v842, %v1242
  %v1259 = vmul.f32 %v843, %v1243
  %v1260 = vmul.f32 %v844, %v1244
  %v1261 = vmul.f32 %v845, %v1245
  %v1262 = vmul.f32 %v846, %v1246
  %v1263 = vlaneseq
  %v1264 = vshrl.u32 %v1263, 7
  %v1265 = vadd.s32 %v1264, 8
  %v1266 = vadd.s32 %v1264, 16
  %v1267 = vadd.s32 %v1264, 24
  %v1268 = vadd.s32 %v1264, 32
  %v1269 = vadd.s32 %v1264, 40
  %v1270 = vadd.s32 %v1264, 48
  %v1271 = vadd.s32 %v1264, 56
  %v1272 = vadd.s32 %v1264, 64
  %v1273 = vadd.s32 %v1264, 72
  %v1274 = vadd.s32 %v1264, 80
  %v1275 = vadd.s32 %v1264, 88
  %v1276 = vadd.s32 %v1264, 96
  %v1277 = vadd.s32 %v1264, 104
  %v1278 = vadd.s32 %v1264, 112
  %v1279 = vadd.s32 %v1264, 120
  %s1280 = smul.u32 0, 128
  %v1281 = vstv %s1280
  %v1282 = vadd.s32 %v1264, %v1281
  %v1283 = vadd.s32 %v1265, %v1281
  %v1284 = vadd.s32 %v1266, %v1281
  %v1285 = vadd.s32 %v1267, %v1281
  %v1286 = vadd.s32 %v1268, %v1281
  %v1287 = vadd.s32 %v1269, %v1281
  %v1288 = vadd.s32 %v1270, %v1281
  %v1289 = vadd.s32 %v1271, %v1281
  %v1290 = vadd.s32 %v1272, %v1281
  %v1291 = vadd.s32 %v1273, %v1281
  %v1292 = vadd.s32 %v1274, %v1281
  %v1293 = vadd.s32 %v1275, %v1281
  %v1294 = vadd.s32 %v1276, %v1281
  %v1295 = vadd.s32 %v1277, %v1281
  %v1296 = vadd.s32 %v1278, %v1281
  %v1297 = vadd.s32 %v1279, %v1281
  %vm1298 = vcmp.lt.s32.totalorder %v1282, 16
  %vm1299 = vcmp.lt.s32.totalorder %v1283, 16
  %vm1300 = vcmp.lt.s32.totalorder %v1284, 16
  %vm1301 = vcmp.lt.s32.totalorder %v1285, 16
  %vm1302 = vcmp.lt.s32.totalorder %v1286, 16
  %vm1303 = vcmp.lt.s32.totalorder %v1287, 16
  %vm1304 = vcmp.lt.s32.totalorder %v1288, 16
  %vm1305 = vcmp.lt.s32.totalorder %v1289, 16
  %vm1306 = vcmp.lt.s32.totalorder %v1290, 16
  %vm1307 = vcmp.lt.s32.totalorder %v1291, 16
  %vm1308 = vcmp.lt.s32.totalorder %v1292, 16
  %vm1309 = vcmp.lt.s32.totalorder %v1293, 16
  %vm1310 = vcmp.lt.s32.totalorder %v1294, 16
  %vm1311 = vcmp.lt.s32.totalorder %v1295, 16
  %vm1312 = vcmp.lt.s32.totalorder %v1296, 16
  %vm1313 = vcmp.lt.s32.totalorder %v1297, 16
  %v1314 = vsel %vm1298, %v815, 0.0
  %v1315 = vsel %vm1299, %v816, 0.0
  %v1316 = vsel %vm1300, %v817, 0.0
  %v1317 = vsel %vm1301, %v818, 0.0
  %v1318 = vsel %vm1302, %v819, 0.0
  %v1319 = vsel %vm1303, %v820, 0.0
  %v1320 = vsel %vm1304, %v821, 0.0
  %v1321 = vsel %vm1305, %v822, 0.0
  %v1322 = vsel %vm1306, %v823, 0.0
  %v1323 = vsel %vm1307, %v824, 0.0
  %v1324 = vsel %vm1308, %v825, 0.0
  %v1325 = vsel %vm1309, %v826, 0.0
  %v1326 = vsel %vm1310, %v827, 0.0
  %v1327 = vsel %vm1311, %v828, 0.0
  %v1328 = vsel %vm1312, %v829, 0.0
  %v1329 = vsel %vm1313, %v830, 0.0
  %v1330 = vpack.c.bf16 %v1315, %v1314
  %v1331 = vpack.c.bf16 %v1317, %v1316
  %v1332 = vpack.c.bf16 %v1319, %v1318
  %v1333 = vpack.c.bf16 %v1321, %v1320
  %v1334 = vpack.c.bf16 %v1323, %v1322
  %v1335 = vpack.c.bf16 %v1325, %v1324
  %v1336 = vpack.c.bf16 %v1327, %v1326
  %v1337 = vpack.c.bf16 %v1329, %v1328
  %v1346 = vunpack.c.l.b16 %v1330
  %v1347 = vunpack.c.h.b16 %v1330
  %v1348 = vunpack.c.l.b16 %v1331
  %v1349 = vunpack.c.h.b16 %v1331
  %v1350 = vunpack.c.l.b16 %v1332
  %v1351 = vunpack.c.h.b16 %v1332
  %v1352 = vunpack.c.l.b16 %v1333
  %v1353 = vunpack.c.h.b16 %v1333
  %v1354 = vunpack.c.l.b16 %v1334
  %v1355 = vunpack.c.h.b16 %v1334
  %v1356 = vunpack.c.l.b16 %v1335
  %v1357 = vunpack.c.h.b16 %v1335
  %v1358 = vunpack.c.l.b16 %v1336
  %v1359 = vunpack.c.h.b16 %v1336
  %v1360 = vunpack.c.l.b16 %v1337
  %v1361 = vunpack.c.h.b16 %v1337
  %v1362 = vpack.c.b16 %v1346, %v1346
  %v1363 = vpack.c.b16 %v1347, %v1347
  %v1364 = vpack.c.b16 %v1348, %v1348
  %v1365 = vpack.c.b16 %v1349, %v1349
  %v1366 = vpack.c.b16 %v1350, %v1350
  %v1367 = vpack.c.b16 %v1351, %v1351
  %v1368 = vpack.c.b16 %v1352, %v1352
  %v1369 = vpack.c.b16 %v1353, %v1353
  %v1370 = vpack.c.b16 %v1354, %v1354
  %v1371 = vpack.c.b16 %v1355, %v1355
  %v1372 = vpack.c.b16 %v1356, %v1356
  %v1373 = vpack.c.b16 %v1357, %v1357
  %v1374 = vpack.c.b16 %v1358, %v1358
  %v1375 = vpack.c.b16 %v1359, %v1359
  %v1376 = vpack.c.b16 %v1360, %v1360
  %v1377 = vpack.c.b16 %v1361, %v1361
  %vm1394 = vcmask 257024
  %1395 = vst.msk [vmem:[%s5] sm:$0xf] %vm1394, %v1362
  %1396 = vst.msk [vmem:[%s5 + $0x4] sm:$0xf] %vm1394, %v1363
  %1397 = vst.msk [vmem:[%s5 + $0x8] sm:$0xf] %vm1394, %v1364
  %1398 = vst.msk [vmem:[%s5 + $0xc] sm:$0xf] %vm1394, %v1365
  %1399 = vst.msk [vmem:[%s5 + $0x10] sm:$0xf] %vm1394, %v1366
  %1400 = vst.msk [vmem:[%s5 + $0x14] sm:$0xf] %vm1394, %v1367
  %1401 = vst.msk [vmem:[%s5 + $0x18] sm:$0xf] %vm1394, %v1368
  %1402 = vst.msk [vmem:[%s5 + $0x1c] sm:$0xf] %vm1394, %v1369
  %1403 = vst.msk [vmem:[%s5 + $0x20] sm:$0xf] %vm1394, %v1370
  %1404 = vst.msk [vmem:[%s5 + $0x24] sm:$0xf] %vm1394, %v1371
  %1405 = vst.msk [vmem:[%s5 + $0x28] sm:$0xf] %vm1394, %v1372
  %1406 = vst.msk [vmem:[%s5 + $0x2c] sm:$0xf] %vm1394, %v1373
  %1407 = vst.msk [vmem:[%s5 + $0x30] sm:$0xf] %vm1394, %v1374
  %1408 = vst.msk [vmem:[%s5 + $0x34] sm:$0xf] %vm1394, %v1375
  %1409 = vst.msk [vmem:[%s5 + $0x38] sm:$0xf] %vm1394, %v1376
  %1410 = vst.msk [vmem:[%s5 + $0x3c] sm:$0xf] %vm1394, %v1377
  %v1411 = vsel %vm1298, %v1247, 0.0
  %v1412 = vsel %vm1299, %v1248, 0.0
  %v1413 = vsel %vm1300, %v1249, 0.0
  %v1414 = vsel %vm1301, %v1250, 0.0
  %v1415 = vsel %vm1302, %v1251, 0.0
  %v1416 = vsel %vm1303, %v1252, 0.0
  %v1417 = vsel %vm1304, %v1253, 0.0
  %v1418 = vsel %vm1305, %v1254, 0.0
  %v1419 = vsel %vm1306, %v1255, 0.0
  %v1420 = vsel %vm1307, %v1256, 0.0
  %v1421 = vsel %vm1308, %v1257, 0.0
  %v1422 = vsel %vm1309, %v1258, 0.0
  %v1423 = vsel %vm1310, %v1259, 0.0
  %v1424 = vsel %vm1311, %v1260, 0.0
  %v1425 = vsel %vm1312, %v1261, 0.0
  %v1426 = vsel %vm1313, %v1262, 0.0
  %v1427 = vpack.c.bf16 %v1412, %v1411
  %v1428 = vpack.c.bf16 %v1414, %v1413
  %v1429 = vpack.c.bf16 %v1416, %v1415
  %v1430 = vpack.c.bf16 %v1418, %v1417
  %v1431 = vpack.c.bf16 %v1420, %v1419
  %v1432 = vpack.c.bf16 %v1422, %v1421
  %v1433 = vpack.c.bf16 %v1424, %v1423
  %v1434 = vpack.c.bf16 %v1426, %v1425
  %v1443 = vunpack.c.l.b16 %v1427
  %v1444 = vunpack.c.h.b16 %v1427
  %v1445 = vunpack.c.l.b16 %v1428
  %v1446 = vunpack.c.h.b16 %v1428
  %v1447 = vunpack.c.l.b16 %v1429
  %v1448 = vunpack.c.h.b16 %v1429
  %v1449 = vunpack.c.l.b16 %v1430
  %v1450 = vunpack.c.h.b16 %v1430
  %v1451 = vunpack.c.l.b16 %v1431
  %v1452 = vunpack.c.h.b16 %v1431
  %v1453 = vunpack.c.l.b16 %v1432
  %v1454 = vunpack.c.h.b16 %v1432
  %v1455 = vunpack.c.l.b16 %v1433
  %v1456 = vunpack.c.h.b16 %v1433
  %v1457 = vunpack.c.l.b16 %v1434
  %v1458 = vunpack.c.h.b16 %v1434
  %v1459 = vpack.c.b16 %v1443, %v1443
  %v1460 = vpack.c.b16 %v1444, %v1444
  %v1461 = vpack.c.b16 %v1445, %v1445
  %v1462 = vpack.c.b16 %v1446, %v1446
  %v1463 = vpack.c.b16 %v1447, %v1447
  %v1464 = vpack.c.b16 %v1448, %v1448
  %v1465 = vpack.c.b16 %v1449, %v1449
  %v1466 = vpack.c.b16 %v1450, %v1450
  %v1467 = vpack.c.b16 %v1451, %v1451
  %v1468 = vpack.c.b16 %v1452, %v1452
  %v1469 = vpack.c.b16 %v1453, %v1453
  %v1470 = vpack.c.b16 %v1454, %v1454
  %v1471 = vpack.c.b16 %v1455, %v1455
  %v1472 = vpack.c.b16 %v1456, %v1456
  %v1473 = vpack.c.b16 %v1457, %v1457
  %v1474 = vpack.c.b16 %v1458, %v1458
  %1491 = vst.msk [vmem:[%s6] sm:$0xf] %vm1394, %v1459
  %1492 = vst.msk [vmem:[%s6 + $0x4] sm:$0xf] %vm1394, %v1460
  %1493 = vst.msk [vmem:[%s6 + $0x8] sm:$0xf] %vm1394, %v1461
  %1494 = vst.msk [vmem:[%s6 + $0xc] sm:$0xf] %vm1394, %v1462
  %1495 = vst.msk [vmem:[%s6 + $0x10] sm:$0xf] %vm1394, %v1463
  %1496 = vst.msk [vmem:[%s6 + $0x14] sm:$0xf] %vm1394, %v1464
  %1497 = vst.msk [vmem:[%s6 + $0x18] sm:$0xf] %vm1394, %v1465
  %1498 = vst.msk [vmem:[%s6 + $0x1c] sm:$0xf] %vm1394, %v1466
  %1499 = vst.msk [vmem:[%s6 + $0x20] sm:$0xf] %vm1394, %v1467
  %1500 = vst.msk [vmem:[%s6 + $0x24] sm:$0xf] %vm1394, %v1468
  %1501 = vst.msk [vmem:[%s6 + $0x28] sm:$0xf] %vm1394, %v1469
  %1502 = vst.msk [vmem:[%s6 + $0x2c] sm:$0xf] %vm1394, %v1470
  %1503 = vst.msk [vmem:[%s6 + $0x30] sm:$0xf] %vm1394, %v1471
  %1504 = vst.msk [vmem:[%s6 + $0x34] sm:$0xf] %vm1394, %v1472
  %1505 = vst.msk [vmem:[%s6 + $0x38] sm:$0xf] %vm1394, %v1473
  %1506 = vst.msk [vmem:[%s6 + $0x3c] sm:$0xf] %vm1394, %v1474
  // Predicated region
  $region22: #{tpu_custom_call.1} parent=0 // pred_check
    _
  $region23: #{tpu_custom_call.1} parent=0 // pred_check_branch
    %1508 = sbr.rel (0) target = $region25
  $region24: #{tpu_custom_call.1} parent=0 // pred_region
    _
  $region25: #{tpu_custom_call.1} parent=0 // pred_fallthru
    _
  // Predicated region
  $region26: #{tpu_custom_call.1} parent=0 // pred_check
    _
  $region27: #{tpu_custom_call.1} parent=0 // pred_check_branch
    %1510 = sbr.rel (0) target = $region29
  $region28: #{tpu_custom_call.1} parent=0 // pred_region
    _
  $region29: #{tpu_custom_call.1} parent=0 // pred_fallthru
    _
  // Predicated region
  $region30: #{tpu_custom_call.1} parent=0 // pred_check
    _
  $region31: #{tpu_custom_call.1} parent=0 // pred_check_branch
    %1512 = sbr.rel (0) target = $region33
  $region32: #{tpu_custom_call.1} parent=0 // pred_region
    _
  $region33: #{tpu_custom_call.1} parent=0 // pred_fallthru
    _
  // Predicated region
  $region34: #{tpu_custom_call.1} parent=0 // pred_check
    _
  $region35: #{tpu_custom_call.1} parent=0 // pred_check_branch
    %1514 = sbr.rel (0) target = $region37
  $region36: #{tpu_custom_call.1} parent=0 // pred_region
    _
  $region37: #{tpu_custom_call.1} parent=0 // pred_fallthru
    _

</llo_original>
